<compile_context>
chip_gen: v7x
topology: tpu7x:2x2x1
jax: 0.10.0
libtpu: 0.0.40
codegen_flags: <defaults>
</compile_context>

<pallas_src>
import functools

import numpy as np
import jax
import jax.numpy as jnp
from jax.experimental import pallas as pl
from jax.experimental.pallas import tpu as pltpu


def _round_up(v, m):
    return ((v + m - 1) // m) * m


def _bilinear_onehots(uv, Ht, Wt):
    """Per-pixel one-hot bilinear weight rows: wxm (Wt, L), wym (Ht, L).

    grid_sample unnormalization with align_corners=False; the zero-padding
    validity masks are folded into the weights (x/y validity are independent,
    so the separable / outer-product forms reproduce grid_sample exactly).
    """
    x = uv[0:1, :]                          # (1, L) normalized x in [-1, 1]
    y = uv[1:2, :]                          # (1, L) normalized y in [-1, 1]
    L = uv.shape[1]

    ix = ((x + 1.0) * Wt - 1.0) * 0.5
    iy = ((y + 1.0) * Ht - 1.0) * 0.5
    ix0 = jnp.floor(ix)
    iy0 = jnp.floor(iy)
    fx = ix - ix0                           # (1, L)
    fy = iy - iy0                           # (1, L)

    wx0 = jnp.where((ix0 >= 0.0) & (ix0 < Wt), 1.0 - fx, 0.0)
    wx1 = jnp.where((ix0 + 1.0 >= 0.0) & (ix0 + 1.0 < Wt), fx, 0.0)
    wy0 = jnp.where((iy0 >= 0.0) & (iy0 < Ht), 1.0 - fy, 0.0)
    wy1 = jnp.where((iy0 + 1.0 >= 0.0) & (iy0 + 1.0 < Ht), fy, 0.0)

    ix0i = ix0.astype(jnp.int32)
    iy0i = iy0.astype(jnp.int32)
    txi = jax.lax.broadcasted_iota(jnp.int32, (Wt, L), 0)
    tyi = jax.lax.broadcasted_iota(jnp.int32, (Ht, L), 0)
    wxm = (jnp.where(txi == ix0i, wx0, 0.0)
           + jnp.where(txi == ix0i + 1, wx1, 0.0))        # (Wt, L)
    wym = (jnp.where(tyi == iy0i, wy0, 0.0)
           + jnp.where(tyi == iy0i + 1, wy1, 0.0))        # (Ht, L)
    return wxm, wym


def _dense_kernel(uv_ref, tex_ref, out_ref, wc_ref, *, C, Ht, Wt):
    # Small-texture path: one dense MXU matmul, full contraction depth Ht*Wt.
    # uv_ref  : (1, 2, Lt)      row 0 = grid-x, row 1 = grid-y
    # tex_ref : (1, C, Ht*Wt)   lane-dense texture (row = channel, lane = ty*Wt+tx)
    # out_ref : (1, C, Lt)
    # wc_ref  : (Ht*Wt, Lt)     VMEM scratch for the combined one-hot weights
    uv = uv_ref[0]
    wxm, wym = _bilinear_onehots(uv, Ht, Wt)

    # Combined weight wc[ty*Wt + tx, l] = wym[ty, l] * wxm[tx, l] (outer
    # product), written row-block by row-block; Wt % 8 == 0 keeps every store
    # sublane-aligned.  Invalid corners already have weight 0 -> zeros padding.
    for t in range(Ht):
        wc_ref[t * Wt:(t + 1) * Wt, :] = wxm * wym[t:t + 1, :]

    out_ref[0] = jnp.dot(tex_ref[0], wc_ref[...],
                         preferred_element_type=jnp.float32)   # (C, Lt)


def _separable_kernel(uv_ref, tex_ref, out_ref, *, C, Ht, Wt):
    # Large-texture path: x-gather on the MXU, accumulated y contraction.
    # uv_ref  : (1, 2, Lt)
    # tex_ref : (1, C*Ht, Wt)   rows ordered (c, ty), lanes = tx
    # out_ref : (1, C, Lt)
    uv = uv_ref[0]
    Lt = uv.shape[1]
    wxm, wym = _bilinear_onehots(uv, Ht, Wt)

    # stage 1 (MXU): gather + x-lerp for every (c, ty) texture row
    g = jnp.dot(tex_ref[0], wxm, preferred_element_type=jnp.float32)  # (C*Ht, Lt)
    g3 = g.reshape(C, Ht, Lt)

    # stage 2: accumulate the Ht contraction in 8-row chunks so only a
    # (C, hc, Lt) product is live at a time (instead of the full (C, Ht, Lt)).
    hc = 8 if Ht % 8 == 0 else Ht
    acc = None
    for h0 in range(0, Ht, hc):
        part = jnp.sum(g3[:, h0:h0 + hc, :] * wym[None, h0:h0 + hc, :], axis=1)
        acc = part if acc is None else acc + part
    out_ref[0] = acc                                                  # (C, Lt)


def sample_texture(pixel_uvs, texture, *, l_tile=512):
    """Pallas equivalent of BasePixelShader.sample_texture.

    pixel_uvs : (N, H, W, K_faces, N_f) float32, only [..., :2] used
    texture   : (N, C, Ht, Wt)          float32 (NCHW, like PyTorch)
    returns   : (N, H, W, K_faces, C)   float32
    """
    N, H, W, K, _ = pixel_uvs.shape
    Nt, C, Ht, Wt = texture.shape
    assert Nt == N
    L = K * H * W

    # layout glue: (N,H,W,K,Nf) -> (N, 2, K, H, W) -> (N, 2, L)  (x/y rows lane-dense)
    uv = jnp.transpose(pixel_uvs[..., :2], (0, 4, 3, 1, 2))
    uv = uv.reshape(N, 2, L).astype(jnp.float32)

    # pixel-axis tile: multiple of 128; L padded with an out-of-range coord so
    # padded lanes get all-zero weights (sliced off afterwards).
    lt = max(128, min(int(l_tile), _round_up(L, 128)))
    lt = _round_up(lt, 128)
    Lp = _round_up(L, lt)
    if Lp != L:
        uv = jnp.pad(uv, ((0, 0), (0, 0), (0, Lp - L)), constant_values=-2.0)
    n_lt = Lp // lt

    use_dense = (Ht * Wt <= 512) and (Wt % 8 == 0)
    if use_dense:
        # lane-dense texture operand (C, Ht*Wt) — no 16-lane padding waste
        tex_flat = texture.reshape(N, C, Ht * Wt).astype(jnp.float32)
        kernel = functools.partial(_dense_kernel, C=C, Ht=Ht, Wt=Wt)
        tex_spec = pl.BlockSpec((1, C, Ht * Wt), lambda n, l: (n, 0, 0))
        scratch = [pltpu.VMEM((Ht * Wt, lt), jnp.float32)]
    else:
        tex_flat = texture.reshape(N, C * Ht, Wt).astype(jnp.float32)
        kernel = functools.partial(_separable_kernel, C=C, Ht=Ht, Wt=Wt)
        tex_spec = pl.BlockSpec((1, C * Ht, Wt), lambda n, l: (n, 0, 0))
        scratch = []

    out = pl.pallas_call(
        kernel,
        out_shape=jax.ShapeDtypeStruct((N, C, Lp), jnp.float32),
        grid=(N, n_lt),                       # L innermost -> texture resident per n
        in_specs=[
            pl.BlockSpec((1, 2, lt), lambda n, l: (n, 0, l)),
            tex_spec,
        ],
        out_specs=pl.BlockSpec((1, C, lt), lambda n, l: (n, 0, l)),
        scratch_shapes=scratch,
        compiler_params=pltpu.CompilerParams(
            dimension_semantics=("parallel", "parallel"),
            vmem_limit_bytes=32 * 1024 * 1024),
    )(uv, tex_flat)

    # layout glue back to the module's contract: (N,C,L) -> (N,H,W,K,C)
    out = out[:, :, :L].reshape(N, C, K, H, W)
    return jnp.transpose(out, (0, 3, 4, 2, 1))


# TODO(synk): BasePixelShader.forward raises NotImplementedError in the
# reference; only sample_texture (the actual compute) is implemented here.


def _reference_sample_texture(pixel_uvs, texture):
    """NumPy reference of F.grid_sample(bilinear, zeros, align_corners=False)."""
    pixel_uvs = np.asarray(pixel_uvs, np.float64)
    texture = np.asarray(texture, np.float64)
    N, H, W, K, _ = pixel_uvs.shape
    _, C, Ht, Wt = texture.shape
    out = np.zeros((N, H, W, K, C), np.float64)
    for n in range(N):
        for k in range(K):
            x = pixel_uvs[n, :, :, k, 0]
            y = pixel_uvs[n, :, :, k, 1]
            ix = ((x + 1.0) * Wt - 1.0) / 2.0
            iy = ((y + 1.0) * Ht - 1.0) / 2.0
            ix0 = np.floor(ix).astype(np.int64)
            iy0 = np.floor(iy).astype(np.int64)
            for cy in (0, 1):
                for cx in (0, 1):
                    px = ix0 + cx
                    py = iy0 + cy
                    w = (1.0 - np.abs(ix - px)) * (1.0 - np.abs(iy - py))
                    valid = (px >= 0) & (px < Wt) & (py >= 0) & (py < Ht)
                    pxc = np.clip(px, 0, Wt - 1)
                    pyc = np.clip(py, 0, Ht - 1)
                    vals = texture[n][:, pyc, pxc]          # (C, H, W)
                    contrib = (w * valid)[None] * vals      # (C, H, W)
                    out[n, :, :, k, :] += np.transpose(contrib, (1, 2, 0))
    return out.astype(np.float32)


if __name__ == "__main__":
    key = jax.random.PRNGKey(0)
    k1, k2, k3, k4 = jax.random.split(key, 4)

    # Case 1: small texture -> dense single-matmul path.
    # L = 3*16*16 = 768 exercises multiple L-tiles (l_tile=512) + pixel padding.
    N, H, W, K, Nf = 2, 16, 16, 3, 3
    C, Ht, Wt = 4, 16, 16
    pixel_uvs = jax.random.uniform(
        k1, (N, H, W, K, Nf), jnp.float32, minval=-1.1, maxval=1.1)
    texture = jax.random.normal(k2, (N, C, Ht, Wt), jnp.float32)
    out = jax.block_until_ready(sample_texture(pixel_uvs, texture))
    ref = _reference_sample_texture(pixel_uvs, texture)
    assert out.shape == (N, H, W, K, C), out.shape
    np.testing.assert_allclose(np.asarray(out), ref, rtol=1e-4, atol=1e-4)

    # Case 2: larger texture (Ht*Wt > 512) -> separable two-stage path.
    N2, H2, W2, K2 = 2, 8, 8, 2
    C2, Ht2, Wt2 = 4, 32, 32
    pixel_uvs2 = jax.random.uniform(
        k3, (N2, H2, W2, K2, Nf), jnp.float32, minval=-1.1, maxval=1.1)
    texture2 = jax.random.normal(k4, (N2, C2, Ht2, Wt2), jnp.float32)
    out2 = jax.block_until_ready(sample_texture(pixel_uvs2, texture2))
    ref2 = _reference_sample_texture(pixel_uvs2, texture2)
    assert out2.shape == (N2, H2, W2, K2, C2), out2.shape
    np.testing.assert_allclose(np.asarray(out2), ref2, rtol=1e-4, atol=1e-4)

    print("KERNEL_OK")
</pallas_src>

<mosaic_0001>
module attributes {stable_mosaic.version = 11 : i64} {
  func.func @_dense_kernel(%arg0: i32, %arg1: i32, %arg2: memref<1x2x512xf32, #tpu.memory_space<vmem>>, %arg3: memref<1x4x256xf32, #tpu.memory_space<vmem>>, %arg4: memref<1x4x512xf32, #tpu.memory_space<vmem>>, %arg5: memref<256x512xf32, #tpu.memory_space<vmem>>) attributes {dimension_semantics = [#tpu.dimension_semantics<parallel>, #tpu.dimension_semantics<parallel>], iteration_bounds = array<i64: 2, 2>, scalar_prefetch = 0 : i64, scratch_operands = 1 : i64, tpu.core_type = #tpu.core_type<tc>, window_params = [{transform_indices = @transform_0, window_bounds = array<i64: 1, 2, 512>}, {transform_indices = @transform_1, window_bounds = array<i64: 1, 4, 256>}, {transform_indices = @transform_2, window_bounds = array<i64: 1, 4, 512>}]} {
    %c0 = arith.constant 0 : index
    %c0_0 = arith.constant 0 : index
    %c0_1 = arith.constant 0 : index
    %0 = vector.load %arg2[%c0, %c0_0, %c0_1] : memref<1x2x512xf32, #tpu.memory_space<vmem>>, vector<1x2x512xf32>
    %1 = vector.shape_cast %0 : vector<1x2x512xf32> to vector<2x512xf32>
    %2 = vector.extract_strided_slice %1 {offsets = [0, 0], sizes = [1, 512], strides = [1, 1]} : vector<2x512xf32> to vector<1x512xf32>
    %3 = vector.extract_strided_slice %1 {offsets = [1, 0], sizes = [1, 512], strides = [1, 1]} : vector<2x512xf32> to vector<1x512xf32>
    %cst = arith.constant 1.000000e+00 : f32
    %4 = vector.broadcast %cst : f32 to vector<1x512xf32>
    %5 = arith.addf %2, %4 : vector<1x512xf32>
    %cst_2 = arith.constant 1.600000e+01 : f32
    %6 = vector.broadcast %cst_2 : f32 to vector<1x512xf32>
    %7 = arith.mulf %5, %6 : vector<1x512xf32>
    %cst_3 = arith.constant 1.000000e+00 : f32
    %8 = vector.broadcast %cst_3 : f32 to vector<1x512xf32>
    %9 = arith.subf %7, %8 : vector<1x512xf32>
    %cst_4 = arith.constant 5.000000e-01 : f32
    %10 = vector.broadcast %cst_4 : f32 to vector<1x512xf32>
    %11 = arith.mulf %9, %10 : vector<1x512xf32>
    %cst_5 = arith.constant 1.000000e+00 : f32
    %12 = vector.broadcast %cst_5 : f32 to vector<1x512xf32>
    %13 = arith.addf %3, %12 : vector<1x512xf32>
    %cst_6 = arith.constant 1.600000e+01 : f32
    %14 = vector.broadcast %cst_6 : f32 to vector<1x512xf32>
    %15 = arith.mulf %13, %14 : vector<1x512xf32>
    %cst_7 = arith.constant 1.000000e+00 : f32
    %16 = vector.broadcast %cst_7 : f32 to vector<1x512xf32>
    %17 = arith.subf %15, %16 : vector<1x512xf32>
    %cst_8 = arith.constant 5.000000e-01 : f32
    %18 = vector.broadcast %cst_8 : f32 to vector<1x512xf32>
    %19 = arith.mulf %17, %18 : vector<1x512xf32>
    %20 = math.floor %11 : vector<1x512xf32>
    %21 = math.floor %19 : vector<1x512xf32>
    %22 = arith.subf %11, %20 : vector<1x512xf32>
    %23 = arith.subf %19, %21 : vector<1x512xf32>
    %cst_9 = arith.constant 0.000000e+00 : f32
    %24 = vector.broadcast %cst_9 : f32 to vector<1x512xf32>
    %25 = arith.cmpf oge, %20, %24 : vector<1x512xf32>
    %cst_10 = arith.constant 1.600000e+01 : f32
    %26 = vector.broadcast %cst_10 : f32 to vector<1x512xf32>
    %27 = arith.cmpf olt, %20, %26 : vector<1x512xf32>
    %28 = arith.andi %25, %27 : vector<1x512xi1>
    %cst_11 = arith.constant 1.000000e+00 : f32
    %29 = vector.broadcast %cst_11 : f32 to vector<1x512xf32>
    %30 = arith.subf %29, %22 : vector<1x512xf32>
    %cst_12 = arith.constant 0.000000e+00 : f32
    %31 = vector.broadcast %cst_12 : f32 to vector<1x512xf32>
    %32 = arith.select %28, %30, %31 : vector<1x512xi1>, vector<1x512xf32>
    %cst_13 = arith.constant 1.000000e+00 : f32
    %33 = vector.broadcast %cst_13 : f32 to vector<1x512xf32>
    %34 = arith.addf %20, %33 : vector<1x512xf32>
    %cst_14 = arith.constant 0.000000e+00 : f32
    %35 = vector.broadcast %cst_14 : f32 to vector<1x512xf32>
    %36 = arith.cmpf oge, %34, %35 : vector<1x512xf32>
    %cst_15 = arith.constant 1.000000e+00 : f32
    %37 = vector.broadcast %cst_15 : f32 to vector<1x512xf32>
    %38 = arith.addf %20, %37 : vector<1x512xf32>
    %cst_16 = arith.constant 1.600000e+01 : f32
    %39 = vector.broadcast %cst_16 : f32 to vector<1x512xf32>
    %40 = arith.cmpf olt, %38, %39 : vector<1x512xf32>
    %41 = arith.andi %36, %40 : vector<1x512xi1>
    %cst_17 = arith.constant 0.000000e+00 : f32
    %42 = vector.broadcast %cst_17 : f32 to vector<1x512xf32>
    %43 = arith.select %41, %22, %42 : vector<1x512xi1>, vector<1x512xf32>
    %cst_18 = arith.constant 0.000000e+00 : f32
    %44 = vector.broadcast %cst_18 : f32 to vector<1x512xf32>
    %45 = arith.cmpf oge, %21, %44 : vector<1x512xf32>
    %cst_19 = arith.constant 1.600000e+01 : f32
    %46 = vector.broadcast %cst_19 : f32 to vector<1x512xf32>
    %47 = arith.cmpf olt, %21, %46 : vector<1x512xf32>
    %48 = arith.andi %45, %47 : vector<1x512xi1>
    %cst_20 = arith.constant 1.000000e+00 : f32
    %49 = vector.broadcast %cst_20 : f32 to vector<1x512xf32>
    %50 = arith.subf %49, %23 : vector<1x512xf32>
    %cst_21 = arith.constant 0.000000e+00 : f32
    %51 = vector.broadcast %cst_21 : f32 to vector<1x512xf32>
    %52 = arith.select %48, %50, %51 : vector<1x512xi1>, vector<1x512xf32>
    %cst_22 = arith.constant 1.000000e+00 : f32
    %53 = vector.broadcast %cst_22 : f32 to vector<1x512xf32>
    %54 = arith.addf %21, %53 : vector<1x512xf32>
    %cst_23 = arith.constant 0.000000e+00 : f32
    %55 = vector.broadcast %cst_23 : f32 to vector<1x512xf32>
    %56 = arith.cmpf oge, %54, %55 : vector<1x512xf32>
    %cst_24 = arith.constant 1.000000e+00 : f32
    %57 = vector.broadcast %cst_24 : f32 to vector<1x512xf32>
    %58 = arith.addf %21, %57 : vector<1x512xf32>
    %cst_25 = arith.constant 1.600000e+01 : f32
    %59 = vector.broadcast %cst_25 : f32 to vector<1x512xf32>
    %60 = arith.cmpf olt, %58, %59 : vector<1x512xf32>
    %61 = arith.andi %56, %60 : vector<1x512xi1>
    %cst_26 = arith.constant 0.000000e+00 : f32
    %62 = vector.broadcast %cst_26 : f32 to vector<1x512xf32>
    %63 = arith.select %61, %23, %62 : vector<1x512xi1>, vector<1x512xf32>
    %64 = arith.fptosi %20 : vector<1x512xf32> to vector<1x512xi32>
    %65 = arith.fptosi %21 : vector<1x512xf32> to vector<1x512xi32>
    %66 = tpu.iota {dimensions = array<i32: 0>} : vector<16x512xi32>
    %67 = tpu.iota {dimensions = array<i32: 0>} : vector<16x512xi32>
    %68 = vector.broadcast %64 : vector<1x512xi32> to vector<16x512xi32>
    %69 = arith.cmpi eq, %66, %68 : vector<16x512xi32>
    %cst_27 = arith.constant 0.000000e+00 : f32
    %70 = vector.shape_cast %32 : vector<1x512xf32> to vector<1x512xf32>
    %71 = vector.broadcast %70 : vector<1x512xf32> to vector<16x512xf32>
    %72 = vector.broadcast %cst_27 : f32 to vector<16x512xf32>
    %73 = arith.select %69, %71, %72 : vector<16x512xi1>, vector<16x512xf32>
    %c1_i32 = arith.constant 1 : i32
    %74 = vector.broadcast %c1_i32 : i32 to vector<1x512xi32>
    %75 = arith.addi %64, %74 : vector<1x512xi32>
    %76 = vector.broadcast %75 : vector<1x512xi32> to vector<16x512xi32>
    %77 = arith.cmpi eq, %66, %76 : vector<16x512xi32>
    %cst_28 = arith.constant 0.000000e+00 : f32
    %78 = vector.shape_cast %43 : vector<1x512xf32> to vector<1x512xf32>
    %79 = vector.broadcast %78 : vector<1x512xf32> to vector<16x512xf32>
    %80 = vector.broadcast %cst_28 : f32 to vector<16x512xf32>
    %81 = arith.select %77, %79, %80 : vector<16x512xi1>, vector<16x512xf32>
    %82 = arith.addf %73, %81 : vector<16x512xf32>
    %83 = vector.broadcast %65 : vector<1x512xi32> to vector<16x512xi32>
    %84 = arith.cmpi eq, %67, %83 : vector<16x512xi32>
    %cst_29 = arith.constant 0.000000e+00 : f32
    %85 = vector.shape_cast %52 : vector<1x512xf32> to vector<1x512xf32>
    %86 = vector.broadcast %85 : vector<1x512xf32> to vector<16x512xf32>
    %87 = vector.broadcast %cst_29 : f32 to vector<16x512xf32>
    %88 = arith.select %84, %86, %87 : vector<16x512xi1>, vector<16x512xf32>
    %c1_i32_30 = arith.constant 1 : i32
    %89 = vector.broadcast %c1_i32_30 : i32 to vector<1x512xi32>
    %90 = arith.addi %65, %89 : vector<1x512xi32>
    %91 = vector.broadcast %90 : vector<1x512xi32> to vector<16x512xi32>
    %92 = arith.cmpi eq, %67, %91 : vector<16x512xi32>
    %cst_31 = arith.constant 0.000000e+00 : f32
    %93 = vector.shape_cast %63 : vector<1x512xf32> to vector<1x512xf32>
    %94 = vector.broadcast %93 : vector<1x512xf32> to vector<16x512xf32>
    %95 = vector.broadcast %cst_31 : f32 to vector<16x512xf32>
    %96 = arith.select %92, %94, %95 : vector<16x512xi1>, vector<16x512xf32>
    %97 = arith.addf %88, %96 : vector<16x512xf32>
    %98 = vector.extract_strided_slice %97 {offsets = [0, 0], sizes = [1, 512], strides = [1, 1]} : vector<16x512xf32> to vector<1x512xf32>
    %99 = vector.broadcast %98 : vector<1x512xf32> to vector<16x512xf32>
    %100 = arith.mulf %82, %99 : vector<16x512xf32>
    %c0_32 = arith.constant 0 : index
    %c0_33 = arith.constant 0 : index
    %101 = vector.load %arg5[%c0_32, %c0_33] : memref<256x512xf32, #tpu.memory_space<vmem>>, vector<16x512xf32>
    tpu.vector_store %arg5[%c0_32, %c0_33], %100 {strides = array<i32>} : memref<256x512xf32, #tpu.memory_space<vmem>>, vector<16x512xf32>,
    %102 = vector.extract_strided_slice %97 {offsets = [1, 0], sizes = [1, 512], strides = [1, 1]} : vector<16x512xf32> to vector<1x512xf32>
    %103 = vector.broadcast %102 : vector<1x512xf32> to vector<16x512xf32>
    %104 = arith.mulf %82, %103 : vector<16x512xf32>
    %c16 = arith.constant 16 : index
    %c0_34 = arith.constant 0 : index
    %105 = vector.load %arg5[%c16, %c0_34] : memref<256x512xf32, #tpu.memory_space<vmem>>, vector<16x512xf32>
    tpu.vector_store %arg5[%c16, %c0_34], %104 {strides = array<i32>} : memref<256x512xf32, #tpu.memory_space<vmem>>, vector<16x512xf32>,
    %106 = vector.extract_strided_slice %97 {offsets = [2, 0], sizes = [1, 512], strides = [1, 1]} : vector<16x512xf32> to vector<1x512xf32>
    %107 = vector.broadcast %106 : vector<1x512xf32> to vector<16x512xf32>
    %108 = arith.mulf %82, %107 : vector<16x512xf32>
    %c32 = arith.constant 32 : index
    %c0_35 = arith.constant 0 : index
    %109 = vector.load %arg5[%c32, %c0_35] : memref<256x512xf32, #tpu.memory_space<vmem>>, vector<16x512xf32>
    tpu.vector_store %arg5[%c32, %c0_35], %108 {strides = array<i32>} : memref<256x512xf32, #tpu.memory_space<vmem>>, vector<16x512xf32>,
    %110 = vector.extract_strided_slice %97 {offsets = [3, 0], sizes = [1, 512], strides = [1, 1]} : vector<16x512xf32> to vector<1x512xf32>
    %111 = vector.broadcast %110 : vector<1x512xf32> to vector<16x512xf32>
    %112 = arith.mulf %82, %111 : vector<16x512xf32>
    %c48 = arith.constant 48 : index
    %c0_36 = arith.constant 0 : index
    %113 = vector.load %arg5[%c48, %c0_36] : memref<256x512xf32, #tpu.memory_space<vmem>>, vector<16x512xf32>
    tpu.vector_store %arg5[%c48, %c0_36], %112 {strides = array<i32>} : memref<256x512xf32, #tpu.memory_space<vmem>>, vector<16x512xf32>,
    %114 = vector.extract_strided_slice %97 {offsets = [4, 0], sizes = [1, 512], strides = [1, 1]} : vector<16x512xf32> to vector<1x512xf32>
    %115 = vector.broadcast %114 : vector<1x512xf32> to vector<16x512xf32>
    %116 = arith.mulf %82, %115 : vector<16x512xf32>
    %c64 = arith.constant 64 : index
    %c0_37 = arith.constant 0 : index
    %117 = vector.load %arg5[%c64, %c0_37] : memref<256x512xf32, #tpu.memory_space<vmem>>, vector<16x512xf32>
    tpu.vector_store %arg5[%c64, %c0_37], %116 {strides = array<i32>} : memref<256x512xf32, #tpu.memory_space<vmem>>, vector<16x512xf32>,
    %118 = vector.extract_strided_slice %97 {offsets = [5, 0], sizes = [1, 512], strides = [1, 1]} : vector<16x512xf32> to vector<1x512xf32>
    %119 = vector.broadcast %118 : vector<1x512xf32> to vector<16x512xf32>
    %120 = arith.mulf %82, %119 : vector<16x512xf32>
    %c80 = arith.constant 80 : index
    %c0_38 = arith.constant 0 : index
    %121 = vector.load %arg5[%c80, %c0_38] : memref<256x512xf32, #tpu.memory_space<vmem>>, vector<16x512xf32>
    tpu.vector_store %arg5[%c80, %c0_38], %120 {strides = array<i32>} : memref<256x512xf32, #tpu.memory_space<vmem>>, vector<16x512xf32>,
    %122 = vector.extract_strided_slice %97 {offsets = [6, 0], sizes = [1, 512], strides = [1, 1]} : vector<16x512xf32> to vector<1x512xf32>
    %123 = vector.broadcast %122 : vector<1x512xf32> to vector<16x512xf32>
    %124 = arith.mulf %82, %123 : vector<16x512xf32>
    %c96 = arith.constant 96 : index
    %c0_39 = arith.constant 0 : index
    %125 = vector.load %arg5[%c96, %c0_39] : memref<256x512xf32, #tpu.memory_space<vmem>>, vector<16x512xf32>
    tpu.vector_store %arg5[%c96, %c0_39], %124 {strides = array<i32>} : memref<256x512xf32, #tpu.memory_space<vmem>>, vector<16x512xf32>,
    %126 = vector.extract_strided_slice %97 {offsets = [7, 0], sizes = [1, 512], strides = [1, 1]} : vector<16x512xf32> to vector<1x512xf32>
    %127 = vector.broadcast %126 : vector<1x512xf32> to vector<16x512xf32>
    %128 = arith.mulf %82, %127 : vector<16x512xf32>
    %c112 = arith.constant 112 : index
    %c0_40 = arith.constant 0 : index
    %129 = vector.load %arg5[%c112, %c0_40] : memref<256x512xf32, #tpu.memory_space<vmem>>, vector<16x512xf32>
    tpu.vector_store %arg5[%c112, %c0_40], %128 {strides = array<i32>} : memref<256x512xf32, #tpu.memory_space<vmem>>, vector<16x512xf32>,
    %130 = vector.extract_strided_slice %97 {offsets = [8, 0], sizes = [1, 512], strides = [1, 1]} : vector<16x512xf32> to vector<1x512xf32>
    %131 = vector.broadcast %130 : vector<1x512xf32> to vector<16x512xf32>
    %132 = arith.mulf %82, %131 : vector<16x512xf32>
    %c128 = arith.constant 128 : index
    %c0_41 = arith.constant 0 : index
    %133 = vector.load %arg5[%c128, %c0_41] : memref<256x512xf32, #tpu.memory_space<vmem>>, vector<16x512xf32>
    tpu.vector_store %arg5[%c128, %c0_41], %132 {strides = array<i32>} : memref<256x512xf32, #tpu.memory_space<vmem>>, vector<16x512xf32>,
    %134 = vector.extract_strided_slice %97 {offsets = [9, 0], sizes = [1, 512], strides = [1, 1]} : vector<16x512xf32> to vector<1x512xf32>
    %135 = vector.broadcast %134 : vector<1x512xf32> to vector<16x512xf32>
    %136 = arith.mulf %82, %135 : vector<16x512xf32>
    %c144 = arith.constant 144 : index
    %c0_42 = arith.constant 0 : index
    %137 = vector.load %arg5[%c144, %c0_42] : memref<256x512xf32, #tpu.memory_space<vmem>>, vector<16x512xf32>
    tpu.vector_store %arg5[%c144, %c0_42], %136 {strides = array<i32>} : memref<256x512xf32, #tpu.memory_space<vmem>>, vector<16x512xf32>,
    %138 = vector.extract_strided_slice %97 {offsets = [10, 0], sizes = [1, 512], strides = [1, 1]} : vector<16x512xf32> to vector<1x512xf32>
    %139 = vector.broadcast %138 : vector<1x512xf32> to vector<16x512xf32>
    %140 = arith.mulf %82, %139 : vector<16x512xf32>
    %c160 = arith.constant 160 : index
    %c0_43 = arith.constant 0 : index
    %141 = vector.load %arg5[%c160, %c0_43] : memref<256x512xf32, #tpu.memory_space<vmem>>, vector<16x512xf32>
    tpu.vector_store %arg5[%c160, %c0_43], %140 {strides = array<i32>} : memref<256x512xf32, #tpu.memory_space<vmem>>, vector<16x512xf32>,
    %142 = vector.extract_strided_slice %97 {offsets = [11, 0], sizes = [1, 512], strides = [1, 1]} : vector<16x512xf32> to vector<1x512xf32>
    %143 = vector.broadcast %142 : vector<1x512xf32> to vector<16x512xf32>
    %144 = arith.mulf %82, %143 : vector<16x512xf32>
    %c176 = arith.constant 176 : index
    %c0_44 = arith.constant 0 : index
    %145 = vector.load %arg5[%c176, %c0_44] : memref<256x512xf32, #tpu.memory_space<vmem>>, vector<16x512xf32>
    tpu.vector_store %arg5[%c176, %c0_44], %144 {strides = array<i32>} : memref<256x512xf32, #tpu.memory_space<vmem>>, vector<16x512xf32>,
    %146 = vector.extract_strided_slice %97 {offsets = [12, 0], sizes = [1, 512], strides = [1, 1]} : vector<16x512xf32> to vector<1x512xf32>
    %147 = vector.broadcast %146 : vector<1x512xf32> to vector<16x512xf32>
    %148 = arith.mulf %82, %147 : vector<16x512xf32>
    %c192 = arith.constant 192 : index
    %c0_45 = arith.constant 0 : index
    %149 = vector.load %arg5[%c192, %c0_45] : memref<256x512xf32, #tpu.memory_space<vmem>>, vector<16x512xf32>
    tpu.vector_store %arg5[%c192, %c0_45], %148 {strides = array<i32>} : memref<256x512xf32, #tpu.memory_space<vmem>>, vector<16x512xf32>,
    %150 = vector.extract_strided_slice %97 {offsets = [13, 0], sizes = [1, 512], strides = [1, 1]} : vector<16x512xf32> to vector<1x512xf32>
    %151 = vector.broadcast %150 : vector<1x512xf32> to vector<16x512xf32>
    %152 = arith.mulf %82, %151 : vector<16x512xf32>
    %c208 = arith.constant 208 : index
    %c0_46 = arith.constant 0 : index
    %153 = vector.load %arg5[%c208, %c0_46] : memref<256x512xf32, #tpu.memory_space<vmem>>, vector<16x512xf32>
    tpu.vector_store %arg5[%c208, %c0_46], %152 {strides = array<i32>} : memref<256x512xf32, #tpu.memory_space<vmem>>, vector<16x512xf32>,
    %154 = vector.extract_strided_slice %97 {offsets = [14, 0], sizes = [1, 512], strides = [1, 1]} : vector<16x512xf32> to vector<1x512xf32>
    %155 = vector.broadcast %154 : vector<1x512xf32> to vector<16x512xf32>
    %156 = arith.mulf %82, %155 : vector<16x512xf32>
    %c224 = arith.constant 224 : index
    %c0_47 = arith.constant 0 : index
    %157 = vector.load %arg5[%c224, %c0_47] : memref<256x512xf32, #tpu.memory_space<vmem>>, vector<16x512xf32>
    tpu.vector_store %arg5[%c224, %c0_47], %156 {strides = array<i32>} : memref<256x512xf32, #tpu.memory_space<vmem>>, vector<16x512xf32>,
    %158 = vector.extract_strided_slice %97 {offsets = [15, 0], sizes = [1, 512], strides = [1, 1]} : vector<16x512xf32> to vector<1x512xf32>
    %159 = vector.broadcast %158 : vector<1x512xf32> to vector<16x512xf32>
    %160 = arith.mulf %82, %159 : vector<16x512xf32>
    %c240 = arith.constant 240 : index
    %c0_48 = arith.constant 0 : index
    %161 = vector.load %arg5[%c240, %c0_48] : memref<256x512xf32, #tpu.memory_space<vmem>>, vector<16x512xf32>
    tpu.vector_store %arg5[%c240, %c0_48], %160 {strides = array<i32>} : memref<256x512xf32, #tpu.memory_space<vmem>>, vector<16x512xf32>,
    %c0_49 = arith.constant 0 : index
    %c0_50 = arith.constant 0 : index
    %c0_51 = arith.constant 0 : index
    %162 = vector.load %arg3[%c0_49, %c0_50, %c0_51] : memref<1x4x256xf32, #tpu.memory_space<vmem>>, vector<1x4x256xf32>
    %163 = vector.shape_cast %162 : vector<1x4x256xf32> to vector<4x256xf32>
    %c0_52 = arith.constant 0 : index
    %c0_53 = arith.constant 0 : index
    %164 = vector.load %arg5[%c0_52, %c0_53] : memref<256x512xf32, #tpu.memory_space<vmem>>, vector<256x512xf32>
    %cst_54 = arith.constant dense<0.000000e+00> : vector<4x512xf32>
    %165 = tpu.matmul %163, %164, %cst_54 {dimension_numbers = #tpu.dot_dimension_numbers<[1], [0], [0], [1], [0, 0, 1, 1], [], []>} : vector<4x256xf32>, vector<256x512xf32>, vector<4x512xf32> -> vector<4x512xf32>
    %c0_55 = arith.constant 0 : index
    %c0_56 = arith.constant 0 : index
    %c0_57 = arith.constant 0 : index
    %166 = vector.load %arg4[%c0_55, %c0_56, %c0_57] : memref<1x4x512xf32, #tpu.memory_space<vmem>>, vector<1x4x512xf32>
    %167 = vector.shape_cast %166 : vector<1x4x512xf32> to vector<4x512xf32>
    %168 = vector.shape_cast %165 : vector<4x512xf32> to vector<1x4x512xf32>
    tpu.vector_store %arg4[%c0_55, %c0_56, %c0_57], %168 {strides = array<i32>} : memref<1x4x512xf32, #tpu.memory_space<vmem>>, vector<1x4x512xf32>,
    return
  }
  func.func @transform_0(%arg0: i32, %arg1: i32) -> (i32, i32, i32) {
    %c0_i32 = arith.constant 0 : i32
    %c0_i32_0 = arith.constant 0 : i32
    return %arg0, %c0_i32, %arg1 : i32, i32, i32
  }
  func.func @transform_1(%arg0: i32, %arg1: i32) -> (i32, i32, i32) {
    %c0_i32 = arith.constant 0 : i32
    %c0_i32_0 = arith.constant 0 : i32
    %c0_i32_1 = arith.constant 0 : i32
    return %arg0, %c0_i32, %c0_i32_0 : i32, i32, i32
  }
  func.func @transform_2(%arg0: i32, %arg1: i32) -> (i32, i32, i32) {
    %c0_i32 = arith.constant 0 : i32
    %c0_i32_0 = arith.constant 0 : i32
    return %arg0, %c0_i32, %arg1 : i32, i32, i32
  }
}

</mosaic_0001>

<llo_original>
// kernel: tpu_custom_call.1
$region0: #{tpu_custom_call.1}
  #allocation0 [shape = 'u32[]', space=smem, size = 0x4, offset = 0x4, fixed_abs, tag = 'smem constant byte address 0x4 - core index']
  #allocation1 [shape = 'u32[144,128]{1,0:T(1,128)}', space=vmem, size = 0x12000, scoped, tag = 'internal scratch']
  #allocation2 [shape = 'f32[256,512]{1,0:T(8,128)}', space=vmem, size = 0x80000, scoped, tag = 'scratch operand']
  %s0 = inlined_call_operand.hbm [shape: f32[2,2,1024], index: 0, kind: input, shape index: {}]
  %s1 = inlined_call_operand.hbm [shape: f32[2,4,256], index: 1, kind: input, shape index: {}]
  %s2 = inlined_call_operand.hbm [shape: f32[2,4,1024], index: 2, kind: output, shape index: {}]
  %s3 = sld [smem:[#allocation0]]
  $region49: #{tpu_custom_call.1} parent=0
    _
  %s5 = ssub.s32 1, %s3
  %s6 = scalar_select 0, %s5, %s3
  $region1: #{tpu_custom_call.1} parent=0
    #allocation3 [shape = 'u8[8192]{0}', space=vmem, size = 0x2000, scoped, tag = 'input window, operand 0']
    #allocation4 [shape = 's32[2]{0}', space=sflag, size = 0x8, scoped, tag = 'scoped memory for tpu_custom_call.1']
    #allocation5 [shape = 's32[2]{0}', space=sflag, size = 0x8, scoped, tag = 'scoped memory for tpu_custom_call.1']
    #allocation6 [shape = 'u8[8192]{0}', space=vmem, size = 0x2000, scoped, tag = 'input window, operand 1']
    #allocation7 [shape = 's32[2]{0}', space=sflag, size = 0x8, scoped, tag = 'scoped memory for tpu_custom_call.1']
    #allocation8 [shape = 'u8[16384]{0}', space=vmem, size = 0x4000, scoped, tag = 'output window, operand 0']
    %7 = vsyncpa [#allocation4], 0
    %s8 = scalar_lea.sflag [#allocation4], 1
    %9 = vsyncpa %s8, 0
    %10 = vsyncpa [#allocation7], 0
    %s11 = scalar_lea.sflag [#allocation7], 1
    %12 = vsyncpa %s11, 0
    %13 = vsyncpa [#allocation5], 0
    %s14 = scalar_lea.sflag [#allocation5], 1
    %15 = vsyncpa %s14, 0
    loop: start=0, step=1, limit=6
    $region2: #{tpu_custom_call.1} parent=1 // loop_pre_header
      _
    $region3: #{tpu_custom_call.1} parent=1 // loop_header
      %s17 = sphi 0, %s21
      %p18 = scmp.ge.s32.totalorder %s17, 6
      %s24 = sphi 0, %s36
      %s25 = sphi 0, %s32
      %s26 = sphi 0, %s24
      %s27 = sphi 0, %s25
      %s28 = sphi 0, %s26
      %s29 = sphi 0, %s27
      %s41 = sphi 0, %s43
      %s44 = sphi 0, %s41
      %s45 = sphi 0, %s44
      %s61 = sphi 0, %s45
      %s67 = sphi 0, %s69
      %s70 = sphi 0, %s67
      %s71 = sphi 0, %s70
      %s87 = sphi 0, %s71
      %s95 = sphi 0, %s97
      %s98 = sphi 0, %s95
      %s99 = sphi 0, %s98
      %s115 = sphi 0, %s99
    $region4: #{tpu_custom_call.1} parent=1 // loop_header_branch
      %20 = sbr.rel (%p18) target = $region8
    $region5: #{tpu_custom_call.1} parent=1 // loop_body
      %s22 = ssub.s32 %s17, 1
      %s23 = ssub.s32 %s17, 2
      %s30 = sadd.s32 1, %s25
      %p31 = scmp.ge.s32.totalorder %s30, 2
      %s32 = scalar_select %p31, 0, %s30
      %s33 = sadd.s32 1, %s24
      %s34 = scalar_select %p31, %s33, %s24
      %p35 = scmp.ge.s32.totalorder %s34, 2
      %s36 = scalar_select %p35, 0, %s34
      %s37 = ssub.s32 %s24, %s36
      %s38 = ssub.s32 %s25, %s32
      %s39 = sor.u32 %s37, %s38
      %p40 = scmp.eq.s32.totalorder %s39, 0
      %s42 = sadd.s32 %s41, 1
      %s43 = scalar_select %p40, %s41, %s42
      %p46 = pneg %p40
      %p47 = scmp.eq.s32.totalorder %s17, 3
      %p48 = por %p46, %p47
      %p49 = scmp.ne.s32.totalorder %s41, %s44
      %p50 = scmp.eq.s32.totalorder %s17, 0
      %p51 = por %p49, %p50
      %p52 = scmp.ne.s32.totalorder %s41, %s44
      %p53 = scmp.eq.s32.totalorder %s22, 3
      %p54 = por %p52, %p53
      %p55 = scmp.ne.s32.totalorder %s44, %s45
      %p56 = scmp.eq.s32.totalorder %s22, 0
      %p57 = por %p55, %p56
      %p58 = scmp.ne.s32.totalorder %s44, %s45
      %p59 = scmp.eq.s32.totalorder %s23, 3
      %p60 = por %p58, %p59
      %p62 = scmp.ne.s32.totalorder %s45, %s61
      %p63 = scmp.eq.s32.totalorder %s23, 0
      %p64 = por %p62, %p63
      %s65 = ssub.s32 %s24, %s36
      %p66 = scmp.eq.s32.totalorder %s65, 0
      %s68 = sadd.s32 %s67, 1
      %s69 = scalar_select %p66, %s67, %s68
      %p72 = pneg %p66
      %p73 = scmp.eq.s32.totalorder %s17, 3
      %p74 = por %p72, %p73
      %p75 = scmp.ne.s32.totalorder %s67, %s70
      %p76 = scmp.eq.s32.totalorder %s17, 0
      %p77 = por %p75, %p76
      %p78 = scmp.ne.s32.totalorder %s67, %s70
      %p79 = scmp.eq.s32.totalorder %s22, 3
      %p80 = por %p78, %p79
      %p81 = scmp.ne.s32.totalorder %s70, %s71
      %p82 = scmp.eq.s32.totalorder %s22, 0
      %p83 = por %p81, %p82
      %p84 = scmp.ne.s32.totalorder %s70, %s71
      %p85 = scmp.eq.s32.totalorder %s23, 3
      %p86 = por %p84, %p85
      %p88 = scmp.ne.s32.totalorder %s71, %s87
      %p89 = scmp.eq.s32.totalorder %s23, 0
      %p90 = por %p88, %p89
      %s91 = ssub.s32 %s24, %s36
      %s92 = ssub.s32 %s25, %s32
      %s93 = sor.u32 %s91, %s92
      %p94 = scmp.eq.s32.totalorder %s93, 0
      %s96 = sadd.s32 %s95, 1
      %s97 = scalar_select %p94, %s95, %s96
      %p100 = pneg %p94
      %p101 = scmp.eq.s32.totalorder %s17, 3
      %p102 = por %p100, %p101
      %p103 = scmp.ne.s32.totalorder %s95, %s98
      %p104 = scmp.eq.s32.totalorder %s17, 0
      %p105 = por %p103, %p104
      %p106 = scmp.ne.s32.totalorder %s95, %s98
      %p107 = scmp.eq.s32.totalorder %s22, 3
      %p108 = por %p106, %p107
      %p109 = scmp.ne.s32.totalorder %s98, %s99
      %p110 = scmp.eq.s32.totalorder %s22, 0
      %p111 = por %p109, %p110
      %p112 = scmp.ne.s32.totalorder %s98, %s99
      %p113 = scmp.eq.s32.totalorder %s23, 3
      %p114 = por %p112, %p113
      %p116 = scmp.ne.s32.totalorder %s99, %s115
      %p117 = scmp.eq.s32.totalorder %s23, 0
      %p118 = por %p116, %p117
      %p119 = scmp.le.s32.totalorder 1, %s17
      %p120 = scmp.lt.s32.totalorder %s17, 5
      %p121 = pnand %p119, %p120
      %p122 = pneg %p121
      // Predicated region
      $region9: #{tpu_custom_call.1} parent=5 // pred_check
        _
      $region10: #{tpu_custom_call.1} parent=5 // pred_check_branch
        %124 = sbr.rel (%p121) target = $region12
      $region11: #{tpu_custom_call.1} parent=5 // pred_region
        %s125 = ssub.s32 %s17, 1
      $region12: #{tpu_custom_call.1} parent=5 // pred_fallthru
        _
      %p126 = scmp.lt.s32.totalorder %s17, 4
      // Predicated region
      $region13: #{tpu_custom_call.1} parent=5 // pred_check
        %p127 = pneg %p126
      $region14: #{tpu_custom_call.1} parent=5 // pred_check_branch
        %129 = sbr.rel (%p127) target = $region16
      $region15: #{tpu_custom_call.1} parent=5 // pred_region
        // Predicated region
        $region17: #{tpu_custom_call.1} parent=15 // pred_check
          %p130 = pneg %p51
        $region18: #{tpu_custom_call.1} parent=15 // pred_check_branch
          %132 = sbr.rel (%p130) target = $region20
        $region19: #{tpu_custom_call.1} parent=15 // pred_region
          %s133 = sand.u32 %s41, 1
          %s134 = scalar_lea.sflag [#allocation4], %s133
          %s135 = sand.u32 %s41, 1
          %s136 = smul.addr %s135, 8
          %s137 = scalar_lea.vmem [#allocation3], %s136
          %s138 = smul.u32 4, %s25
          %s140 = ssub.s32 128, 128
          %141 = vsyncadd %s134, %s140
          %s142 = smul.addr %s24, 8
          %s143 = sadd.s32 %s138, %s142
          %s144 = smul.addr %s143, 32
          %s145 = scalar_lea.hbm %s0, %s144
          %s147 = sshll.u32 %s137, 4
          %s148 = int_to_ptr.vmem [resolvable:$true] %s147
          %150 = dma.hbm_to_vmem [thread:$0]  %s145, 128, %s148, %s134
        $region20: #{tpu_custom_call.1} parent=15 // pred_fallthru
          _
        // Predicated region
        $region21: #{tpu_custom_call.1} parent=15 // pred_check
          %p151 = pneg %p77
        $region22: #{tpu_custom_call.1} parent=15 // pred_check_branch
          %153 = sbr.rel (%p151) target = $region24
        $region23: #{tpu_custom_call.1} parent=15 // pred_region
          %s154 = sand.u32 %s67, 1
          %s155 = scalar_lea.sflag [#allocation7], %s154
          %s156 = sand.u32 %s67, 1
          %s157 = smul.addr %s156, 8
          %s158 = scalar_lea.vmem [#allocation6], %s157
          %s160 = ssub.s32 128, 128
          %161 = vsyncadd %s155, %s160
          %s162 = smul.addr %s24, 2
          %s163 = smul.addr %s162, 64
          %s164 = scalar_lea.hbm %s1, %s163
          %s166 = sshll.u32 %s158, 4
          %s167 = int_to_ptr.vmem [resolvable:$true] %s166
          %169 = dma.hbm_to_vmem [thread:$0]  %s164, 128, %s167, %s155
        $region24: #{tpu_custom_call.1} parent=15 // pred_fallthru
          _
      $region16: #{tpu_custom_call.1} parent=5 // pred_fallthru
        _
      %p170 = scmp.le.s32.totalorder 1, %s17
      %p171 = scmp.lt.s32.totalorder %s17, 5
      %p172 = pnand %p170, %p171
      %p173 = pneg %p172
      // Predicated region
      $region25: #{tpu_custom_call.1} parent=5 // pred_check
        _
      $region26: #{tpu_custom_call.1} parent=5 // pred_check_branch
        %175 = sbr.rel (%p172) target = $region28
      $region27: #{tpu_custom_call.1} parent=5 // pred_region
        %s176 = ssub.s32 %s17, 1
        %s177 = sand.u32 %s44, 1
        %s178 = scalar_lea.sflag [#allocation4], %s177
        %s179 = sand.u32 %s44, 1
        %s180 = smul.addr %s179, 8
        %s181 = scalar_lea.vmem [#allocation3], %s180
        // Predicated region
        $region29: #{tpu_custom_call.1} parent=27 // pred_check
          %p182 = pneg %p57
        $region30: #{tpu_custom_call.1} parent=27 // pred_check_branch
          %184 = sbr.rel (%p182) target = $region32
        $region31: #{tpu_custom_call.1} parent=27 // pred_region
          %185 = dma.done %s178, 128
        $region32: #{tpu_custom_call.1} parent=27 // pred_fallthru
          _
        %s186 = sand.u32 %s70, 1
        %s187 = scalar_lea.sflag [#allocation7], %s186
        %s188 = sand.u32 %s70, 1
        %s189 = smul.addr %s188, 8
        %s190 = scalar_lea.vmem [#allocation6], %s189
        // Predicated region
        $region33: #{tpu_custom_call.1} parent=27 // pred_check
          %p191 = pneg %p83
        $region34: #{tpu_custom_call.1} parent=27 // pred_check_branch
          %193 = sbr.rel (%p191) target = $region36
        $region35: #{tpu_custom_call.1} parent=27 // pred_region
          %194 = dma.done %s187, 128
        $region36: #{tpu_custom_call.1} parent=27 // pred_fallthru
          _
        %s195 = sand.u32 %s44, 1
        %s196 = scalar_lea.sflag [#allocation4], %s195
        %s197 = sand.u32 %s44, 1
        %s198 = smul.addr %s197, 8
        %s199 = scalar_lea.vmem [#allocation3], %s198
        %p200 = pneg %p57
        %p201 = pneg %p54
        %s202 = sand.u32 %s70, 1
        %s203 = scalar_lea.sflag [#allocation7], %s202
        %s204 = sand.u32 %s70, 1
        %s205 = smul.addr %s204, 8
        %s206 = scalar_lea.vmem [#allocation6], %s205
        %p207 = pneg %p83
        %p208 = pneg %p80
        %p209 = pneg %p111
        %p210 = pneg %p108
        %s211 = sand.u32 %s98, 1
        %s212 = scalar_lea.sflag [#allocation5], %s211
        %s213 = sand.u32 %s98, 1
        %s214 = smul.addr %s213, 16
        %s215 = scalar_lea.vmem [#allocation8], %s214
        %s216 = smul.u32 4, %s27
        %s217 = smul.u32 4, %s27
        %v218 = vld [vmem:[%s181] sm:$0xff]
        %v219 = vadd.f32 %v218, 1.0
        %v220 = vmul.f32 %v219, 16.0
        %v221 = vsub.f32 %v220, 1.0
        %v222 = vmul.f32 %v221, 0.5
        %v223 = vfloor.f32 %v222
        %v224 = vsub.f32 %v222, %v223
        %vm225 = vcmp.ge.f32.partialorder %v223, 0.0
        %vm226 = vcmp.lt.f32.partialorder %v223, 16.0
        %vm227 = vmand %vm225, %vm226
        %v228 = vsub.f32 1.0, %v224
        %v229 = vsel %vm227, %v228, 0.0
        %v230 = vadd.f32 %v223, 1.0
        %vm231 = vcmp.ge.f32.partialorder %v230, 0.0
        %vm232 = vcmp.lt.f32.partialorder %v230, 16.0
        %vm233 = vmand %vm231, %vm232
        %v234 = vsel %vm233, %v224, 0.0
        %v235 = vcvt.f32.s32.to.zero.pseudo %v223
        %v236 = vlaneseq
        %v237 = vshrl.u32 %v236, 7
        %v238 = vadd.s32 %v237, 8
        %v239 = vlaneseq
        %v240 = vshrl.u32 %v239, 7
        %v241 = vsub.s32 0, %v240
        %v242 = vrot.slane %v235, %v241
        %v243 = vlaneseq
        %v244 = vshrl.u32 %v243, 7
        %v245 = vsub.s32 2, %v244
        %v246 = vrot.slane %v235, %v245
        %v247 = vlaneseq
        %v248 = vshrl.u32 %v247, 7
        %v249 = vsub.s32 4, %v248
        %v250 = vrot.slane %v235, %v249
        %v251 = vlaneseq
        %v252 = vshrl.u32 %v251, 7
        %v253 = vsub.s32 6, %v252
        %v254 = vrot.slane %v235, %v253
        %v255 = vlaneseq
        %v256 = vshrl.u32 %v255, 7
        %v257 = vsub.s32 0, %v256
        %v258 = vrot.slane %v242, %v257
        %v259 = vlaneseq
        %v260 = vshrl.u32 %v259, 7
        %v261 = vsub.s32 0, %v260
        %v262 = vrot.slane %v246, %v261
        %v263 = vlaneseq
        %v264 = vshrl.u32 %v263, 7
        %v265 = vsub.s32 0, %v264
        %v266 = vrot.slane %v250, %v265
        %v267 = vlaneseq
        %v268 = vshrl.u32 %v267, 7
        %v269 = vsub.s32 0, %v268
        %v270 = vrot.slane %v254, %v269
        %vm271 = vcmp.eq.s32.totalorder %v237, %v258
        %vm272 = vcmp.eq.s32.totalorder %v237, %v262
        %vm273 = vcmp.eq.s32.totalorder %v237, %v266
        %vm274 = vcmp.eq.s32.totalorder %v237, %v270
        %vm275 = vcmp.eq.s32.totalorder %v238, %v258
        %vm276 = vcmp.eq.s32.totalorder %v238, %v262
        %vm277 = vcmp.eq.s32.totalorder %v238, %v266
        %vm278 = vcmp.eq.s32.totalorder %v238, %v270
        %v280 = vlaneseq
        %v281 = vshrl.u32 %v280, 7
        %v282 = vsub.s32 0, %v281
        %v283 = vrot.slane %v229, %v282
        %v284 = vlaneseq
        %v285 = vshrl.u32 %v284, 7
        %v286 = vsub.s32 2, %v285
        %v287 = vrot.slane %v229, %v286
        %v288 = vlaneseq
        %v289 = vshrl.u32 %v288, 7
        %v290 = vsub.s32 4, %v289
        %v291 = vrot.slane %v229, %v290
        %v292 = vlaneseq
        %v293 = vshrl.u32 %v292, 7
        %v294 = vsub.s32 6, %v293
        %v295 = vrot.slane %v229, %v294
        %v300 = vlaneseq
        %v301 = vshrl.u32 %v300, 7
        %v302 = vsub.s32 0, %v301
        %v303 = vrot.slane %v283, %v302
        %v304 = vlaneseq
        %v305 = vshrl.u32 %v304, 7
        %v306 = vsub.s32 0, %v305
        %v307 = vrot.slane %v287, %v306
        %v308 = vlaneseq
        %v309 = vshrl.u32 %v308, 7
        %v310 = vsub.s32 0, %v309
        %v311 = vrot.slane %v291, %v310
        %v312 = vlaneseq
        %v313 = vshrl.u32 %v312, 7
        %v314 = vsub.s32 0, %v313
        %v315 = vrot.slane %v295, %v314
        %v316 = vsel %vm271, %v303, 0.0
        %v317 = vsel %vm272, %v307, 0.0
        %v318 = vsel %vm273, %v311, 0.0
        %v319 = vsel %vm274, %v315, 0.0
        %v320 = vsel %vm275, %v303, 0.0
        %v321 = vsel %vm276, %v307, 0.0
        %v322 = vsel %vm277, %v311, 0.0
        %v323 = vsel %vm278, %v315, 0.0
        %v324 = vadd.s32 %v235, 1
        %v325 = vlaneseq
        %v326 = vshrl.u32 %v325, 7
        %v327 = vsub.s32 0, %v326
        %v328 = vrot.slane %v324, %v327
        %v329 = vlaneseq
        %v330 = vshrl.u32 %v329, 7
        %v331 = vsub.s32 2, %v330
        %v332 = vrot.slane %v324, %v331
        %v333 = vlaneseq
        %v334 = vshrl.u32 %v333, 7
        %v335 = vsub.s32 4, %v334
        %v336 = vrot.slane %v324, %v335
        %v337 = vlaneseq
        %v338 = vshrl.u32 %v337, 7
        %v339 = vsub.s32 6, %v338
        %v340 = vrot.slane %v324, %v339
        %v341 = vlaneseq
        %v342 = vshrl.u32 %v341, 7
        %v343 = vsub.s32 0, %v342
        %v344 = vrot.slane %v328, %v343
        %v345 = vlaneseq
        %v346 = vshrl.u32 %v345, 7
        %v347 = vsub.s32 0, %v346
        %v348 = vrot.slane %v332, %v347
        %v349 = vlaneseq
        %v350 = vshrl.u32 %v349, 7
        %v351 = vsub.s32 0, %v350
        %v352 = vrot.slane %v336, %v351
        %v353 = vlaneseq
        %v354 = vshrl.u32 %v353, 7
        %v355 = vsub.s32 0, %v354
        %v356 = vrot.slane %v340, %v355
        %vm357 = vcmp.eq.s32.totalorder %v237, %v344
        %vm358 = vcmp.eq.s32.totalorder %v237, %v348
        %vm359 = vcmp.eq.s32.totalorder %v237, %v352
        %vm360 = vcmp.eq.s32.totalorder %v237, %v356
        %vm361 = vcmp.eq.s32.totalorder %v238, %v344
        %vm362 = vcmp.eq.s32.totalorder %v238, %v348
        %vm363 = vcmp.eq.s32.totalorder %v238, %v352
        %vm364 = vcmp.eq.s32.totalorder %v238, %v356
        %v366 = vlaneseq
        %v367 = vshrl.u32 %v366, 7
        %v368 = vsub.s32 0, %v367
        %v369 = vrot.slane %v234, %v368
        %v370 = vlaneseq
        %v371 = vshrl.u32 %v370, 7
        %v372 = vsub.s32 2, %v371
        %v373 = vrot.slane %v234, %v372
        %v374 = vlaneseq
        %v375 = vshrl.u32 %v374, 7
        %v376 = vsub.s32 4, %v375
        %v377 = vrot.slane %v234, %v376
        %v378 = vlaneseq
        %v379 = vshrl.u32 %v378, 7
        %v380 = vsub.s32 6, %v379
        %v381 = vrot.slane %v234, %v380
        %v386 = vlaneseq
        %v387 = vshrl.u32 %v386, 7
        %v388 = vsub.s32 0, %v387
        %v389 = vrot.slane %v369, %v388
        %v390 = vlaneseq
        %v391 = vshrl.u32 %v390, 7
        %v392 = vsub.s32 0, %v391
        %v393 = vrot.slane %v373, %v392
        %v394 = vlaneseq
        %v395 = vshrl.u32 %v394, 7
        %v396 = vsub.s32 0, %v395
        %v397 = vrot.slane %v377, %v396
        %v398 = vlaneseq
        %v399 = vshrl.u32 %v398, 7
        %v400 = vsub.s32 0, %v399
        %v401 = vrot.slane %v381, %v400
        %v402 = vsel %vm357, %v389, 0.0
        %v403 = vsel %vm358, %v393, 0.0
        %v404 = vsel %vm359, %v397, 0.0
        %v405 = vsel %vm360, %v401, 0.0
        %v406 = vsel %vm361, %v389, 0.0
        %v407 = vsel %vm362, %v393, 0.0
        %v408 = vsel %vm363, %v397, 0.0
        %v409 = vsel %vm364, %v401, 0.0
        %v410 = vadd.f32 %v316, %v402
        %v411 = vadd.f32 %v317, %v403
        %v412 = vadd.f32 %v318, %v404
        %v413 = vadd.f32 %v319, %v405
        %v414 = vadd.f32 %v320, %v406
        %v415 = vadd.f32 %v321, %v407
        %v416 = vadd.f32 %v322, %v408
        %v417 = vadd.f32 %v323, %v409
        %v418 = vlaneseq
        %v419 = vshrl.u32 %v418, 7
        %v420 = vsub.s32 1, %v419
        %v421 = vrot.slane %v235, %v420
        %v422 = vlaneseq
        %v423 = vshrl.u32 %v422, 7
        %v424 = vsub.s32 3, %v423
        %v425 = vrot.slane %v235, %v424
        %v426 = vlaneseq
        %v427 = vshrl.u32 %v426, 7
        %v428 = vsub.s32 5, %v427
        %v429 = vrot.slane %v235, %v428
        %v430 = vlaneseq
        %v431 = vshrl.u32 %v430, 7
        %v432 = vsub.s32 7, %v431
        %v433 = vrot.slane %v235, %v432
        %v434 = vlaneseq
        %v435 = vshrl.u32 %v434, 7
        %v436 = vsub.s32 1, %v435
        %v437 = vrot.slane %v421, %v436
        %v438 = vlaneseq
        %v439 = vshrl.u32 %v438, 7
        %v440 = vsub.s32 1, %v439
        %v441 = vrot.slane %v425, %v440
        %v442 = vlaneseq
        %v443 = vshrl.u32 %v442, 7
        %v444 = vsub.s32 1, %v443
        %v445 = vrot.slane %v429, %v444
        %v446 = vlaneseq
        %v447 = vshrl.u32 %v446, 7
        %v448 = vsub.s32 1, %v447
        %v449 = vrot.slane %v433, %v448
        %vm450 = vcmp.eq.s32.totalorder %v237, %v437
        %vm451 = vcmp.eq.s32.totalorder %v237, %v441
        %vm452 = vcmp.eq.s32.totalorder %v237, %v445
        %vm453 = vcmp.eq.s32.totalorder %v237, %v449
        %vm454 = vcmp.eq.s32.totalorder %v238, %v437
        %vm455 = vcmp.eq.s32.totalorder %v238, %v441
        %vm456 = vcmp.eq.s32.totalorder %v238, %v445
        %vm457 = vcmp.eq.s32.totalorder %v238, %v449
        %v458 = vlaneseq
        %v459 = vshrl.u32 %v458, 7
        %v460 = vsub.s32 1, %v459
        %v461 = vrot.slane %v229, %v460
        %v462 = vlaneseq
        %v463 = vshrl.u32 %v462, 7
        %v464 = vsub.s32 3, %v463
        %v465 = vrot.slane %v229, %v464
        %v466 = vlaneseq
        %v467 = vshrl.u32 %v466, 7
        %v468 = vsub.s32 5, %v467
        %v469 = vrot.slane %v229, %v468
        %v470 = vlaneseq
        %v471 = vshrl.u32 %v470, 7
        %v472 = vsub.s32 7, %v471
        %v473 = vrot.slane %v229, %v472
        %v478 = vlaneseq
        %v479 = vshrl.u32 %v478, 7
        %v480 = vsub.s32 1, %v479
        %v481 = vrot.slane %v461, %v480
        %v482 = vlaneseq
        %v483 = vshrl.u32 %v482, 7
        %v484 = vsub.s32 1, %v483
        %v485 = vrot.slane %v465, %v484
        %v486 = vlaneseq
        %v487 = vshrl.u32 %v486, 7
        %v488 = vsub.s32 1, %v487
        %v489 = vrot.slane %v469, %v488
        %v490 = vlaneseq
        %v491 = vshrl.u32 %v490, 7
        %v492 = vsub.s32 1, %v491
        %v493 = vrot.slane %v473, %v492
        %v494 = vsel %vm450, %v481, 0.0
        %v495 = vsel %vm451, %v485, 0.0
        %v496 = vsel %vm452, %v489, 0.0
        %v497 = vsel %vm453, %v493, 0.0
        %v498 = vsel %vm454, %v481, 0.0
        %v499 = vsel %vm455, %v485, 0.0
        %v500 = vsel %vm456, %v489, 0.0
        %v501 = vsel %vm457, %v493, 0.0
        %v502 = vlaneseq
        %v503 = vshrl.u32 %v502, 7
        %v504 = vsub.s32 1, %v503
        %v505 = vrot.slane %v324, %v504
        %v506 = vlaneseq
        %v507 = vshrl.u32 %v506, 7
        %v508 = vsub.s32 3, %v507
        %v509 = vrot.slane %v324, %v508
        %v510 = vlaneseq
        %v511 = vshrl.u32 %v510, 7
        %v512 = vsub.s32 5, %v511
        %v513 = vrot.slane %v324, %v512
        %v514 = vlaneseq
        %v515 = vshrl.u32 %v514, 7
        %v516 = vsub.s32 7, %v515
        %v517 = vrot.slane %v324, %v516
        %v518 = vlaneseq
        %v519 = vshrl.u32 %v518, 7
        %v520 = vsub.s32 1, %v519
        %v521 = vrot.slane %v505, %v520
        %v522 = vlaneseq
        %v523 = vshrl.u32 %v522, 7
        %v524 = vsub.s32 1, %v523
        %v525 = vrot.slane %v509, %v524
        %v526 = vlaneseq
        %v527 = vshrl.u32 %v526, 7
        %v528 = vsub.s32 1, %v527
        %v529 = vrot.slane %v513, %v528
        %v530 = vlaneseq
        %v531 = vshrl.u32 %v530, 7
        %v532 = vsub.s32 1, %v531
        %v533 = vrot.slane %v517, %v532
        %vm534 = vcmp.eq.s32.totalorder %v237, %v521
        %vm535 = vcmp.eq.s32.totalorder %v237, %v525
        %vm536 = vcmp.eq.s32.totalorder %v237, %v529
        %vm537 = vcmp.eq.s32.totalorder %v237, %v533
        %vm538 = vcmp.eq.s32.totalorder %v238, %v521
        %vm539 = vcmp.eq.s32.totalorder %v238, %v525
        %vm540 = vcmp.eq.s32.totalorder %v238, %v529
        %vm541 = vcmp.eq.s32.totalorder %v238, %v533
        %v542 = vlaneseq
        %v543 = vshrl.u32 %v542, 7
        %v544 = vsub.s32 1, %v543
        %v545 = vrot.slane %v234, %v544
        %v546 = vlaneseq
        %v547 = vshrl.u32 %v546, 7
        %v548 = vsub.s32 3, %v547
        %v549 = vrot.slane %v234, %v548
        %v550 = vlaneseq
        %v551 = vshrl.u32 %v550, 7
        %v552 = vsub.s32 5, %v551
        %v553 = vrot.slane %v234, %v552
        %v554 = vlaneseq
        %v555 = vshrl.u32 %v554, 7
        %v556 = vsub.s32 7, %v555
        %v557 = vrot.slane %v234, %v556
        %v562 = vlaneseq
        %v563 = vshrl.u32 %v562, 7
        %v564 = vsub.s32 1, %v563
        %v565 = vrot.slane %v545, %v564
        %v566 = vlaneseq
        %v567 = vshrl.u32 %v566, 7
        %v568 = vsub.s32 1, %v567
        %v569 = vrot.slane %v549, %v568
        %v570 = vlaneseq
        %v571 = vshrl.u32 %v570, 7
        %v572 = vsub.s32 1, %v571
        %v573 = vrot.slane %v553, %v572
        %v574 = vlaneseq
        %v575 = vshrl.u32 %v574, 7
        %v576 = vsub.s32 1, %v575
        %v577 = vrot.slane %v557, %v576
        %v578 = vsel %vm534, %v565, 0.0
        %v579 = vsel %vm535, %v569, 0.0
        %v580 = vsel %vm536, %v573, 0.0
        %v581 = vsel %vm537, %v577, 0.0
        %v582 = vsel %vm538, %v565, 0.0
        %v583 = vsel %vm539, %v569, 0.0
        %v584 = vsel %vm540, %v573, 0.0
        %v585 = vsel %vm541, %v577, 0.0
        %v586 = vadd.f32 %v494, %v578
        %v587 = vadd.f32 %v495, %v579
        %v588 = vadd.f32 %v496, %v580
        %v589 = vadd.f32 %v497, %v581
        %v590 = vadd.f32 %v498, %v582
        %v591 = vadd.f32 %v499, %v583
        %v592 = vadd.f32 %v500, %v584
        %v593 = vadd.f32 %v501, %v585
        %v594 = vlaneseq
        %v595 = vshrl.u32 %v594, 7
        %v596 = vsub.s32 0, %v595
        %v597 = vrot.slane %v586, %v596
        %v598 = vlaneseq
        %v599 = vshrl.u32 %v598, 7
        %v600 = vsub.s32 0, %v599
        %v601 = vrot.slane %v587, %v600
        %v602 = vlaneseq
        %v603 = vshrl.u32 %v602, 7
        %v604 = vsub.s32 0, %v603
        %v605 = vrot.slane %v588, %v604
        %v606 = vlaneseq
        %v607 = vshrl.u32 %v606, 7
        %v608 = vsub.s32 0, %v607
        %v609 = vrot.slane %v589, %v608
        %v610 = vmul.f32 %v410, %v597
        %v611 = vmul.f32 %v411, %v601
        %v612 = vmul.f32 %v412, %v605
        %v613 = vmul.f32 %v413, %v609
        %v614 = vmul.f32 %v414, %v597
        %v615 = vmul.f32 %v415, %v601
        %v616 = vmul.f32 %v416, %v605
        %v617 = vmul.f32 %v417, %v609
        %618 = vst [vmem:[#allocation2] sm:$0xff] %v610
        %619 = vst [vmem:[#allocation2 + $0x8] sm:$0xff] %v611
        %620 = vst [vmem:[#allocation2 + $0x10] sm:$0xff] %v612
        %621 = vst [vmem:[#allocation2 + $0x18] sm:$0xff] %v613
        %622 = vst [vmem:[#allocation2 + $0x20] sm:$0xff] %v614
        %623 = vst [vmem:[#allocation2 + $0x28] sm:$0xff] %v615
        %624 = vst [vmem:[#allocation2 + $0x30] sm:$0xff] %v616
        %625 = vst [vmem:[#allocation2 + $0x38] sm:$0xff] %v617
        %v626 = vlaneseq
        %v627 = vshrl.u32 %v626, 7
        %v628 = vsub.s32 1, %v627
        %v629 = vrot.slane %v586, %v628
        %v630 = vlaneseq
        %v631 = vshrl.u32 %v630, 7
        %v632 = vsub.s32 1, %v631
        %v633 = vrot.slane %v587, %v632
        %v634 = vlaneseq
        %v635 = vshrl.u32 %v634, 7
        %v636 = vsub.s32 1, %v635
        %v637 = vrot.slane %v588, %v636
        %v638 = vlaneseq
        %v639 = vshrl.u32 %v638, 7
        %v640 = vsub.s32 1, %v639
        %v641 = vrot.slane %v589, %v640
        %v642 = vmul.f32 %v410, %v629
        %v643 = vmul.f32 %v411, %v633
        %v644 = vmul.f32 %v412, %v637
        %v645 = vmul.f32 %v413, %v641
        %v646 = vmul.f32 %v414, %v629
        %v647 = vmul.f32 %v415, %v633
        %v648 = vmul.f32 %v416, %v637
        %v649 = vmul.f32 %v417, %v641
        %650 = vst [vmem:[#allocation2 + $0x40] sm:$0xff] %v642
        %651 = vst [vmem:[#allocation2 + $0x48] sm:$0xff] %v643
        %652 = vst [vmem:[#allocation2 + $0x50] sm:$0xff] %v644
        %653 = vst [vmem:[#allocation2 + $0x58] sm:$0xff] %v645
        %654 = vst [vmem:[#allocation2 + $0x60] sm:$0xff] %v646
        %655 = vst [vmem:[#allocation2 + $0x68] sm:$0xff] %v647
        %656 = vst [vmem:[#allocation2 + $0x70] sm:$0xff] %v648
        %657 = vst [vmem:[#allocation2 + $0x78] sm:$0xff] %v649
        %v658 = vlaneseq
        %v659 = vshrl.u32 %v658, 7
        %v660 = vsub.s32 2, %v659
        %v661 = vrot.slane %v586, %v660
        %v662 = vlaneseq
        %v663 = vshrl.u32 %v662, 7
        %v664 = vsub.s32 2, %v663
        %v665 = vrot.slane %v587, %v664
        %v666 = vlaneseq
        %v667 = vshrl.u32 %v666, 7
        %v668 = vsub.s32 2, %v667
        %v669 = vrot.slane %v588, %v668
        %v670 = vlaneseq
        %v671 = vshrl.u32 %v670, 7
        %v672 = vsub.s32 2, %v671
        %v673 = vrot.slane %v589, %v672
        %v674 = vmul.f32 %v410, %v661
        %v675 = vmul.f32 %v411, %v665
        %v676 = vmul.f32 %v412, %v669
        %v677 = vmul.f32 %v413, %v673
        %v678 = vmul.f32 %v414, %v661
        %v679 = vmul.f32 %v415, %v665
        %v680 = vmul.f32 %v416, %v669
        %v681 = vmul.f32 %v417, %v673
        %682 = vst [vmem:[#allocation2 + $0x80] sm:$0xff] %v674
        %683 = vst [vmem:[#allocation2 + $0x88] sm:$0xff] %v675
        %684 = vst [vmem:[#allocation2 + $0x90] sm:$0xff] %v676
        %685 = vst [vmem:[#allocation2 + $0x98] sm:$0xff] %v677
        %686 = vst [vmem:[#allocation2 + $0xa0] sm:$0xff] %v678
        %687 = vst [vmem:[#allocation2 + $0xa8] sm:$0xff] %v679
        %688 = vst [vmem:[#allocation2 + $0xb0] sm:$0xff] %v680
        %689 = vst [vmem:[#allocation2 + $0xb8] sm:$0xff] %v681
        %v690 = vlaneseq
        %v691 = vshrl.u32 %v690, 7
        %v692 = vsub.s32 3, %v691
        %v693 = vrot.slane %v586, %v692
        %v694 = vlaneseq
        %v695 = vshrl.u32 %v694, 7
        %v696 = vsub.s32 3, %v695
        %v697 = vrot.slane %v587, %v696
        %v698 = vlaneseq
        %v699 = vshrl.u32 %v698, 7
        %v700 = vsub.s32 3, %v699
        %v701 = vrot.slane %v588, %v700
        %v702 = vlaneseq
        %v703 = vshrl.u32 %v702, 7
        %v704 = vsub.s32 3, %v703
        %v705 = vrot.slane %v589, %v704
        %v706 = vmul.f32 %v410, %v693
        %v707 = vmul.f32 %v411, %v697
        %v708 = vmul.f32 %v412, %v701
        %v709 = vmul.f32 %v413, %v705
        %v710 = vmul.f32 %v414, %v693
        %v711 = vmul.f32 %v415, %v697
        %v712 = vmul.f32 %v416, %v701
        %v713 = vmul.f32 %v417, %v705
        %714 = vst [vmem:[#allocation2 + $0xc0] sm:$0xff] %v706
        %715 = vst [vmem:[#allocation2 + $0xc8] sm:$0xff] %v707
        %716 = vst [vmem:[#allocation2 + $0xd0] sm:$0xff] %v708
        %717 = vst [vmem:[#allocation2 + $0xd8] sm:$0xff] %v709
        %718 = vst [vmem:[#allocation2 + $0xe0] sm:$0xff] %v710
        %719 = vst [vmem:[#allocation2 + $0xe8] sm:$0xff] %v711
        %720 = vst [vmem:[#allocation2 + $0xf0] sm:$0xff] %v712
        %721 = vst [vmem:[#allocation2 + $0xf8] sm:$0xff] %v713
        %v722 = vlaneseq
        %v723 = vshrl.u32 %v722, 7
        %v724 = vsub.s32 4, %v723
        %v725 = vrot.slane %v586, %v724
        %v726 = vlaneseq
        %v727 = vshrl.u32 %v726, 7
        %v728 = vsub.s32 4, %v727
        %v729 = vrot.slane %v587, %v728
        %v730 = vlaneseq
        %v731 = vshrl.u32 %v730, 7
        %v732 = vsub.s32 4, %v731
        %v733 = vrot.slane %v588, %v732
        %v734 = vlaneseq
        %v735 = vshrl.u32 %v734, 7
        %v736 = vsub.s32 4, %v735
        %v737 = vrot.slane %v589, %v736
        %v738 = vmul.f32 %v410, %v725
        %v739 = vmul.f32 %v411, %v729
        %v740 = vmul.f32 %v412, %v733
        %v741 = vmul.f32 %v413, %v737
        %v742 = vmul.f32 %v414, %v725
        %v743 = vmul.f32 %v415, %v729
        %v744 = vmul.f32 %v416, %v733
        %v745 = vmul.f32 %v417, %v737
        %746 = vst [vmem:[#allocation2 + $0x100] sm:$0xff] %v738
        %747 = vst [vmem:[#allocation2 + $0x108] sm:$0xff] %v739
        %748 = vst [vmem:[#allocation2 + $0x110] sm:$0xff] %v740
        %749 = vst [vmem:[#allocation2 + $0x118] sm:$0xff] %v741
        %750 = vst [vmem:[#allocation2 + $0x120] sm:$0xff] %v742
        %751 = vst [vmem:[#allocation2 + $0x128] sm:$0xff] %v743
        %752 = vst [vmem:[#allocation2 + $0x130] sm:$0xff] %v744
        %753 = vst [vmem:[#allocation2 + $0x138] sm:$0xff] %v745
        %v754 = vlaneseq
        %v755 = vshrl.u32 %v754, 7
        %v756 = vsub.s32 5, %v755
        %v757 = vrot.slane %v586, %v756
        %v758 = vlaneseq
        %v759 = vshrl.u32 %v758, 7
        %v760 = vsub.s32 5, %v759
        %v761 = vrot.slane %v587, %v760
        %v762 = vlaneseq
        %v763 = vshrl.u32 %v762, 7
        %v764 = vsub.s32 5, %v763
        %v765 = vrot.slane %v588, %v764
        %v766 = vlaneseq
        %v767 = vshrl.u32 %v766, 7
        %v768 = vsub.s32 5, %v767
        %v769 = vrot.slane %v589, %v768
        %v770 = vmul.f32 %v410, %v757
        %v771 = vmul.f32 %v411, %v761
        %v772 = vmul.f32 %v412, %v765
        %v773 = vmul.f32 %v413, %v769
        %v774 = vmul.f32 %v414, %v757
        %v775 = vmul.f32 %v415, %v761
        %v776 = vmul.f32 %v416, %v765
        %v777 = vmul.f32 %v417, %v769
        %778 = vst [vmem:[#allocation2 + $0x140] sm:$0xff] %v770
        %779 = vst [vmem:[#allocation2 + $0x148] sm:$0xff] %v771
        %780 = vst [vmem:[#allocation2 + $0x150] sm:$0xff] %v772
        %781 = vst [vmem:[#allocation2 + $0x158] sm:$0xff] %v773
        %782 = vst [vmem:[#allocation2 + $0x160] sm:$0xff] %v774
        %783 = vst [vmem:[#allocation2 + $0x168] sm:$0xff] %v775
        %784 = vst [vmem:[#allocation2 + $0x170] sm:$0xff] %v776
        %785 = vst [vmem:[#allocation2 + $0x178] sm:$0xff] %v777
        %v786 = vlaneseq
        %v787 = vshrl.u32 %v786, 7
        %v788 = vsub.s32 6, %v787
        %v789 = vrot.slane %v586, %v788
        %v790 = vlaneseq
        %v791 = vshrl.u32 %v790, 7
        %v792 = vsub.s32 6, %v791
        %v793 = vrot.slane %v587, %v792
        %v794 = vlaneseq
        %v795 = vshrl.u32 %v794, 7
        %v796 = vsub.s32 6, %v795
        %v797 = vrot.slane %v588, %v796
        %v798 = vlaneseq
        %v799 = vshrl.u32 %v798, 7
        %v800 = vsub.s32 6, %v799
        %v801 = vrot.slane %v589, %v800
        %v802 = vmul.f32 %v410, %v789
        %v803 = vmul.f32 %v411, %v793
        %v804 = vmul.f32 %v412, %v797
        %v805 = vmul.f32 %v413, %v801
        %v806 = vmul.f32 %v414, %v789
        %v807 = vmul.f32 %v415, %v793
        %v808 = vmul.f32 %v416, %v797
        %v809 = vmul.f32 %v417, %v801
        %810 = vst [vmem:[#allocation2 + $0x180] sm:$0xff] %v802
        %811 = vst [vmem:[#allocation2 + $0x188] sm:$0xff] %v803
        %812 = vst [vmem:[#allocation2 + $0x190] sm:$0xff] %v804
        %813 = vst [vmem:[#allocation2 + $0x198] sm:$0xff] %v805
        %814 = vst [vmem:[#allocation2 + $0x1a0] sm:$0xff] %v806
        %815 = vst [vmem:[#allocation2 + $0x1a8] sm:$0xff] %v807
        %816 = vst [vmem:[#allocation2 + $0x1b0] sm:$0xff] %v808
        %817 = vst [vmem:[#allocation2 + $0x1b8] sm:$0xff] %v809
        %v818 = vlaneseq
        %v819 = vshrl.u32 %v818, 7
        %v820 = vsub.s32 7, %v819
        %v821 = vrot.slane %v586, %v820
        %v822 = vlaneseq
        %v823 = vshrl.u32 %v822, 7
        %v824 = vsub.s32 7, %v823
        %v825 = vrot.slane %v587, %v824
        %v826 = vlaneseq
        %v827 = vshrl.u32 %v826, 7
        %v828 = vsub.s32 7, %v827
        %v829 = vrot.slane %v588, %v828
        %v830 = vlaneseq
        %v831 = vshrl.u32 %v830, 7
        %v832 = vsub.s32 7, %v831
        %v833 = vrot.slane %v589, %v832
        %v834 = vmul.f32 %v410, %v821
        %v835 = vmul.f32 %v411, %v825
        %v836 = vmul.f32 %v412, %v829
        %v837 = vmul.f32 %v413, %v833
        %v838 = vmul.f32 %v414, %v821
        %v839 = vmul.f32 %v415, %v825
        %v840 = vmul.f32 %v416, %v829
        %v841 = vmul.f32 %v417, %v833
        %842 = vst [vmem:[#allocation2 + $0x1c0] sm:$0xff] %v834
        %843 = vst [vmem:[#allocation2 + $0x1c8] sm:$0xff] %v835
        %844 = vst [vmem:[#allocation2 + $0x1d0] sm:$0xff] %v836
        %845 = vst [vmem:[#allocation2 + $0x1d8] sm:$0xff] %v837
        %846 = vst [vmem:[#allocation2 + $0x1e0] sm:$0xff] %v838
        %847 = vst [vmem:[#allocation2 + $0x1e8] sm:$0xff] %v839
        %848 = vst [vmem:[#allocation2 + $0x1f0] sm:$0xff] %v840
        %849 = vst [vmem:[#allocation2 + $0x1f8] sm:$0xff] %v841
        %v850 = vlaneseq
        %v851 = vshrl.u32 %v850, 7
        %v852 = vsub.s32 0, %v851
        %v853 = vrot.slane %v590, %v852
        %v854 = vlaneseq
        %v855 = vshrl.u32 %v854, 7
        %v856 = vsub.s32 0, %v855
        %v857 = vrot.slane %v591, %v856
        %v858 = vlaneseq
        %v859 = vshrl.u32 %v858, 7
        %v860 = vsub.s32 0, %v859
        %v861 = vrot.slane %v592, %v860
        %v862 = vlaneseq
        %v863 = vshrl.u32 %v862, 7
        %v864 = vsub.s32 0, %v863
        %v865 = vrot.slane %v593, %v864
        %v866 = vmul.f32 %v410, %v853
        %v867 = vmul.f32 %v411, %v857
        %v868 = vmul.f32 %v412, %v861
        %v869 = vmul.f32 %v413, %v865
        %v870 = vmul.f32 %v414, %v853
        %v871 = vmul.f32 %v415, %v857
        %v872 = vmul.f32 %v416, %v861
        %v873 = vmul.f32 %v417, %v865
        %874 = vst [vmem:[#allocation2 + $0x200] sm:$0xff] %v866
        %875 = vst [vmem:[#allocation2 + $0x208] sm:$0xff] %v867
        %876 = vst [vmem:[#allocation2 + $0x210] sm:$0xff] %v868
        %877 = vst [vmem:[#allocation2 + $0x218] sm:$0xff] %v869
        %878 = vst [vmem:[#allocation2 + $0x220] sm:$0xff] %v870
        %879 = vst [vmem:[#allocation2 + $0x228] sm:$0xff] %v871
        %880 = vst [vmem:[#allocation2 + $0x230] sm:$0xff] %v872
        %881 = vst [vmem:[#allocation2 + $0x238] sm:$0xff] %v873
        %v882 = vlaneseq
        %v883 = vshrl.u32 %v882, 7
        %v884 = vsub.s32 1, %v883
        %v885 = vrot.slane %v590, %v884
        %v886 = vlaneseq
        %v887 = vshrl.u32 %v886, 7
        %v888 = vsub.s32 1, %v887
        %v889 = vrot.slane %v591, %v888
        %v890 = vlaneseq
        %v891 = vshrl.u32 %v890, 7
        %v892 = vsub.s32 1, %v891
        %v893 = vrot.slane %v592, %v892
        %v894 = vlaneseq
        %v895 = vshrl.u32 %v894, 7
        %v896 = vsub.s32 1, %v895
        %v897 = vrot.slane %v593, %v896
        %v898 = vmul.f32 %v410, %v885
        %v899 = vmul.f32 %v411, %v889
        %v900 = vmul.f32 %v412, %v893
        %v901 = vmul.f32 %v413, %v897
        %v902 = vmul.f32 %v414, %v885
        %v903 = vmul.f32 %v415, %v889
        %v904 = vmul.f32 %v416, %v893
        %v905 = vmul.f32 %v417, %v897
        %906 = vst [vmem:[#allocation2 + $0x240] sm:$0xff] %v898
        %907 = vst [vmem:[#allocation2 + $0x248] sm:$0xff] %v899
        %908 = vst [vmem:[#allocation2 + $0x250] sm:$0xff] %v900
        %909 = vst [vmem:[#allocation2 + $0x258] sm:$0xff] %v901
        %910 = vst [vmem:[#allocation2 + $0x260] sm:$0xff] %v902
        %911 = vst [vmem:[#allocation2 + $0x268] sm:$0xff] %v903
        %912 = vst [vmem:[#allocation2 + $0x270] sm:$0xff] %v904
        %913 = vst [vmem:[#allocation2 + $0x278] sm:$0xff] %v905
        %v914 = vlaneseq
        %v915 = vshrl.u32 %v914, 7
        %v916 = vsub.s32 2, %v915
        %v917 = vrot.slane %v590, %v916
        %v918 = vlaneseq
        %v919 = vshrl.u32 %v918, 7
        %v920 = vsub.s32 2, %v919
        %v921 = vrot.slane %v591, %v920
        %v922 = vlaneseq
        %v923 = vshrl.u32 %v922, 7
        %v924 = vsub.s32 2, %v923
        %v925 = vrot.slane %v592, %v924
        %v926 = vlaneseq
        %v927 = vshrl.u32 %v926, 7
        %v928 = vsub.s32 2, %v927
        %v929 = vrot.slane %v593, %v928
        %v930 = vmul.f32 %v410, %v917
        %v931 = vmul.f32 %v411, %v921
        %v932 = vmul.f32 %v412, %v925
        %v933 = vmul.f32 %v413, %v929
        %v934 = vmul.f32 %v414, %v917
        %v935 = vmul.f32 %v415, %v921
        %v936 = vmul.f32 %v416, %v925
        %v937 = vmul.f32 %v417, %v929
        %938 = vst [vmem:[#allocation2 + $0x280] sm:$0xff] %v930
        %939 = vst [vmem:[#allocation2 + $0x288] sm:$0xff] %v931
        %940 = vst [vmem:[#allocation2 + $0x290] sm:$0xff] %v932
        %941 = vst [vmem:[#allocation2 + $0x298] sm:$0xff] %v933
        %942 = vst [vmem:[#allocation2 + $0x2a0] sm:$0xff] %v934
        %943 = vst [vmem:[#allocation2 + $0x2a8] sm:$0xff] %v935
        %944 = vst [vmem:[#allocation2 + $0x2b0] sm:$0xff] %v936
        %945 = vst [vmem:[#allocation2 + $0x2b8] sm:$0xff] %v937
        %v946 = vlaneseq
        %v947 = vshrl.u32 %v946, 7
        %v948 = vsub.s32 3, %v947
        %v949 = vrot.slane %v590, %v948
        %v950 = vlaneseq
        %v951 = vshrl.u32 %v950, 7
        %v952 = vsub.s32 3, %v951
        %v953 = vrot.slane %v591, %v952
        %v954 = vlaneseq
        %v955 = vshrl.u32 %v954, 7
        %v956 = vsub.s32 3, %v955
        %v957 = vrot.slane %v592, %v956
        %v958 = vlaneseq
        %v959 = vshrl.u32 %v958, 7
        %v960 = vsub.s32 3, %v959
        %v961 = vrot.slane %v593, %v960
        %v962 = vmul.f32 %v410, %v949
        %v963 = vmul.f32 %v411, %v953
        %v964 = vmul.f32 %v412, %v957
        %v965 = vmul.f32 %v413, %v961
        %v966 = vmul.f32 %v414, %v949
        %v967 = vmul.f32 %v415, %v953
        %v968 = vmul.f32 %v416, %v957
        %v969 = vmul.f32 %v417, %v961
        %970 = vst [vmem:[#allocation2 + $0x2c0] sm:$0xff] %v962
        %971 = vst [vmem:[#allocation2 + $0x2c8] sm:$0xff] %v963
        %972 = vst [vmem:[#allocation2 + $0x2d0] sm:$0xff] %v964
        %973 = vst [vmem:[#allocation2 + $0x2d8] sm:$0xff] %v965
        %974 = vst [vmem:[#allocation2 + $0x2e0] sm:$0xff] %v966
        %975 = vst [vmem:[#allocation2 + $0x2e8] sm:$0xff] %v967
        %976 = vst [vmem:[#allocation2 + $0x2f0] sm:$0xff] %v968
        %977 = vst [vmem:[#allocation2 + $0x2f8] sm:$0xff] %v969
        %v978 = vlaneseq
        %v979 = vshrl.u32 %v978, 7
        %v980 = vsub.s32 4, %v979
        %v981 = vrot.slane %v590, %v980
        %v982 = vlaneseq
        %v983 = vshrl.u32 %v982, 7
        %v984 = vsub.s32 4, %v983
        %v985 = vrot.slane %v591, %v984
        %v986 = vlaneseq
        %v987 = vshrl.u32 %v986, 7
        %v988 = vsub.s32 4, %v987
        %v989 = vrot.slane %v592, %v988
        %v990 = vlaneseq
        %v991 = vshrl.u32 %v990, 7
        %v992 = vsub.s32 4, %v991
        %v993 = vrot.slane %v593, %v992
        %v994 = vmul.f32 %v410, %v981
        %v995 = vmul.f32 %v411, %v985
        %v996 = vmul.f32 %v412, %v989
        %v997 = vmul.f32 %v413, %v993
        %v998 = vmul.f32 %v414, %v981
        %v999 = vmul.f32 %v415, %v985
        %v1000 = vmul.f32 %v416, %v989
        %v1001 = vmul.f32 %v417, %v993
        %1002 = vst [vmem:[#allocation2 + $0x300] sm:$0xff] %v994
        %1003 = vst [vmem:[#allocation2 + $0x308] sm:$0xff] %v995
        %1004 = vst [vmem:[#allocation2 + $0x310] sm:$0xff] %v996
        %1005 = vst [vmem:[#allocation2 + $0x318] sm:$0xff] %v997
        %1006 = vst [vmem:[#allocation2 + $0x320] sm:$0xff] %v998
        %1007 = vst [vmem:[#allocation2 + $0x328] sm:$0xff] %v999
        %1008 = vst [vmem:[#allocation2 + $0x330] sm:$0xff] %v1000
        %1009 = vst [vmem:[#allocation2 + $0x338] sm:$0xff] %v1001
        %v1010 = vlaneseq
        %v1011 = vshrl.u32 %v1010, 7
        %v1012 = vsub.s32 5, %v1011
        %v1013 = vrot.slane %v590, %v1012
        %v1014 = vlaneseq
        %v1015 = vshrl.u32 %v1014, 7
        %v1016 = vsub.s32 5, %v1015
        %v1017 = vrot.slane %v591, %v1016
        %v1018 = vlaneseq
        %v1019 = vshrl.u32 %v1018, 7
        %v1020 = vsub.s32 5, %v1019
        %v1021 = vrot.slane %v592, %v1020
        %v1022 = vlaneseq
        %v1023 = vshrl.u32 %v1022, 7
        %v1024 = vsub.s32 5, %v1023
        %v1025 = vrot.slane %v593, %v1024
        %v1026 = vmul.f32 %v410, %v1013
        %v1027 = vmul.f32 %v411, %v1017
        %v1028 = vmul.f32 %v412, %v1021
        %v1029 = vmul.f32 %v413, %v1025
        %v1030 = vmul.f32 %v414, %v1013
        %v1031 = vmul.f32 %v415, %v1017
        %v1032 = vmul.f32 %v416, %v1021
        %v1033 = vmul.f32 %v417, %v1025
        %1034 = vst [vmem:[#allocation2 + $0x340] sm:$0xff] %v1026
        %1035 = vst [vmem:[#allocation2 + $0x348] sm:$0xff] %v1027
        %1036 = vst [vmem:[#allocation2 + $0x350] sm:$0xff] %v1028
        %1037 = vst [vmem:[#allocation2 + $0x358] sm:$0xff] %v1029
        %1038 = vst [vmem:[#allocation2 + $0x360] sm:$0xff] %v1030
        %1039 = vst [vmem:[#allocation2 + $0x368] sm:$0xff] %v1031
        %1040 = vst [vmem:[#allocation2 + $0x370] sm:$0xff] %v1032
        %1041 = vst [vmem:[#allocation2 + $0x378] sm:$0xff] %v1033
        %v1042 = vlaneseq
        %v1043 = vshrl.u32 %v1042, 7
        %v1044 = vsub.s32 6, %v1043
        %v1045 = vrot.slane %v590, %v1044
        %v1046 = vlaneseq
        %v1047 = vshrl.u32 %v1046, 7
        %v1048 = vsub.s32 6, %v1047
        %v1049 = vrot.slane %v591, %v1048
        %v1050 = vlaneseq
        %v1051 = vshrl.u32 %v1050, 7
        %v1052 = vsub.s32 6, %v1051
        %v1053 = vrot.slane %v592, %v1052
        %v1054 = vlaneseq
        %v1055 = vshrl.u32 %v1054, 7
        %v1056 = vsub.s32 6, %v1055
        %v1057 = vrot.slane %v593, %v1056
        %v1058 = vmul.f32 %v410, %v1045
        %v1059 = vmul.f32 %v411, %v1049
        %v1060 = vmul.f32 %v412, %v1053
        %v1061 = vmul.f32 %v413, %v1057
        %v1062 = vmul.f32 %v414, %v1045
        %v1063 = vmul.f32 %v415, %v1049
        %v1064 = vmul.f32 %v416, %v1053
        %v1065 = vmul.f32 %v417, %v1057
        %1066 = vst [vmem:[#allocation2 + $0x380] sm:$0xff] %v1058
        %1067 = vst [vmem:[#allocation2 + $0x388] sm:$0xff] %v1059
        %1068 = vst [vmem:[#allocation2 + $0x390] sm:$0xff] %v1060
        %1069 = vst [vmem:[#allocation2 + $0x398] sm:$0xff] %v1061
        %1070 = vst [vmem:[#allocation2 + $0x3a0] sm:$0xff] %v1062
        %1071 = vst [vmem:[#allocation2 + $0x3a8] sm:$0xff] %v1063
        %1072 = vst [vmem:[#allocation2 + $0x3b0] sm:$0xff] %v1064
        %1073 = vst [vmem:[#allocation2 + $0x3b8] sm:$0xff] %v1065
        %v1074 = vlaneseq
        %v1075 = vshrl.u32 %v1074, 7
        %v1076 = vsub.s32 7, %v1075
        %v1077 = vrot.slane %v590, %v1076
        %v1078 = vlaneseq
        %v1079 = vshrl.u32 %v1078, 7
        %v1080 = vsub.s32 7, %v1079
        %v1081 = vrot.slane %v591, %v1080
        %v1082 = vlaneseq
        %v1083 = vshrl.u32 %v1082, 7
        %v1084 = vsub.s32 7, %v1083
        %v1085 = vrot.slane %v592, %v1084
        %v1086 = vlaneseq
        %v1087 = vshrl.u32 %v1086, 7
        %v1088 = vsub.s32 7, %v1087
        %v1089 = vrot.slane %v593, %v1088
        %v1090 = vmul.f32 %v410, %v1077
        %v1091 = vmul.f32 %v411, %v1081
        %v1092 = vmul.f32 %v412, %v1085
        %v1093 = vmul.f32 %v413, %v1089
        %v1094 = vmul.f32 %v414, %v1077
        %v1095 = vmul.f32 %v415, %v1081
        %v1096 = vmul.f32 %v416, %v1085
        %v1097 = vmul.f32 %v417, %v1089
        %1098 = vst [vmem:[#allocation2 + $0x3c0] sm:$0xff] %v1090
        %1099 = vst [vmem:[#allocation2 + $0x3c8] sm:$0xff] %v1091
        %1100 = vst [vmem:[#allocation2 + $0x3d0] sm:$0xff] %v1092
        %1101 = vst [vmem:[#allocation2 + $0x3d8] sm:$0xff] %v1093
        %1102 = vst [vmem:[#allocation2 + $0x3e0] sm:$0xff] %v1094
        %1103 = vst [vmem:[#allocation2 + $0x3e8] sm:$0xff] %v1095
        %1104 = vst [vmem:[#allocation2 + $0x3f0] sm:$0xff] %v1096
        %1105 = vst [vmem:[#allocation2 + $0x3f8] sm:$0xff] %v1097
        %v1106 = vld [vmem:[%s190] sm:$0xff]
        %v1107 = vld [vmem:[#allocation2] sm:$0xff]
        %v1108 = vld [vmem:[#allocation2 + $0x8] sm:$0xff]
        %v1109 = vld [vmem:[#allocation2 + $0x10] sm:$0xff]
        %v1110 = vld [vmem:[#allocation2 + $0x18] sm:$0xff]
        %v1111 = vld [vmem:[#allocation2 + $0x20] sm:$0xff]
        %v1112 = vld [vmem:[#allocation2 + $0x28] sm:$0xff]
        %v1113 = vld [vmem:[#allocation2 + $0x30] sm:$0xff]
        %v1114 = vld [vmem:[#allocation2 + $0x38] sm:$0xff]
        %v1115 = vld [vmem:[#allocation2 + $0x40] sm:$0xff]
        %v1116 = vld [vmem:[#allocation2 + $0x48] sm:$0xff]
        %v1117 = vld [vmem:[#allocation2 + $0x50] sm:$0xff]
        %v1118 = vld [vmem:[#allocation2 + $0x58] sm:$0xff]
        %v1119 = vld [vmem:[#allocation2 + $0x60] sm:$0xff]
        %v1120 = vld [vmem:[#allocation2 + $0x68] sm:$0xff]
        %v1121 = vld [vmem:[#allocation2 + $0x70] sm:$0xff]
        %v1122 = vld [vmem:[#allocation2 + $0x78] sm:$0xff]
        %v1123 = vld [vmem:[#allocation2 + $0x80] sm:$0xff]
        %v1124 = vld [vmem:[#allocation2 + $0x88] sm:$0xff]
        %v1125 = vld [vmem:[#allocation2 + $0x90] sm:$0xff]
        %v1126 = vld [vmem:[#allocation2 + $0x98] sm:$0xff]
        %v1127 = vld [vmem:[#allocation2 + $0xa0] sm:$0xff]
        %v1128 = vld [vmem:[#allocation2 + $0xa8] sm:$0xff]
        %v1129 = vld [vmem:[#allocation2 + $0xb0] sm:$0xff]
        %v1130 = vld [vmem:[#allocation2 + $0xb8] sm:$0xff]
        %v1131 = vld [vmem:[#allocation2 + $0xc0] sm:$0xff]
        %v1132 = vld [vmem:[#allocation2 + $0xc8] sm:$0xff]
        %v1133 = vld [vmem:[#allocation2 + $0xd0] sm:$0xff]
        %v1134 = vld [vmem:[#allocation2 + $0xd8] sm:$0xff]
        %v1135 = vld [vmem:[#allocation2 + $0xe0] sm:$0xff]
        %v1136 = vld [vmem:[#allocation2 + $0xe8] sm:$0xff]
        %v1137 = vld [vmem:[#allocation2 + $0xf0] sm:$0xff]
        %v1138 = vld [vmem:[#allocation2 + $0xf8] sm:$0xff]
        %v1139 = vld [vmem:[#allocation2 + $0x100] sm:$0xff]
        %v1140 = vld [vmem:[#allocation2 + $0x108] sm:$0xff]
        %v1141 = vld [vmem:[#allocation2 + $0x110] sm:$0xff]
        %v1142 = vld [vmem:[#allocation2 + $0x118] sm:$0xff]
        %v1143 = vld [vmem:[#allocation2 + $0x120] sm:$0xff]
        %v1144 = vld [vmem:[#allocation2 + $0x128] sm:$0xff]
        %v1145 = vld [vmem:[#allocation2 + $0x130] sm:$0xff]
        %v1146 = vld [vmem:[#allocation2 + $0x138] sm:$0xff]
        %v1147 = vld [vmem:[#allocation2 + $0x140] sm:$0xff]
        %v1148 = vld [vmem:[#allocation2 + $0x148] sm:$0xff]
        %v1149 = vld [vmem:[#allocation2 + $0x150] sm:$0xff]
        %v1150 = vld [vmem:[#allocation2 + $0x158] sm:$0xff]
        %v1151 = vld [vmem:[#allocation2 + $0x160] sm:$0xff]
        %v1152 = vld [vmem:[#allocation2 + $0x168] sm:$0xff]
        %v1153 = vld [vmem:[#allocation2 + $0x170] sm:$0xff]
        %v1154 = vld [vmem:[#allocation2 + $0x178] sm:$0xff]
        %v1155 = vld [vmem:[#allocation2 + $0x180] sm:$0xff]
        %v1156 = vld [vmem:[#allocation2 + $0x188] sm:$0xff]
        %v1157 = vld [vmem:[#allocation2 + $0x190] sm:$0xff]
        %v1158 = vld [vmem:[#allocation2 + $0x198] sm:$0xff]
        %v1159 = vld [vmem:[#allocation2 + $0x1a0] sm:$0xff]
        %v1160 = vld [vmem:[#allocation2 + $0x1a8] sm:$0xff]
        %v1161 = vld [vmem:[#allocation2 + $0x1b0] sm:$0xff]
        %v1162 = vld [vmem:[#allocation2 + $0x1b8] sm:$0xff]
        %v1163 = vld [vmem:[#allocation2 + $0x1c0] sm:$0xff]
        %v1164 = vld [vmem:[#allocation2 + $0x1c8] sm:$0xff]
        %v1165 = vld [vmem:[#allocation2 + $0x1d0] sm:$0xff]
        %v1166 = vld [vmem:[#allocation2 + $0x1d8] sm:$0xff]
        %v1167 = vld [vmem:[#allocation2 + $0x1e0] sm:$0xff]
        %v1168 = vld [vmem:[#allocation2 + $0x1e8] sm:$0xff]
        %v1169 = vld [vmem:[#allocation2 + $0x1f0] sm:$0xff]
        %v1170 = vld [vmem:[#allocation2 + $0x1f8] sm:$0xff]
        %v1171 = vld [vmem:[#allocation2 + $0x200] sm:$0xff]
        %v1172 = vld [vmem:[#allocation2 + $0x208] sm:$0xff]
        %v1173 = vld [vmem:[#allocation2 + $0x210] sm:$0xff]
        %v1174 = vld [vmem:[#allocation2 + $0x218] sm:$0xff]
        %v1175 = vld [vmem:[#allocation2 + $0x220] sm:$0xff]
        %v1176 = vld [vmem:[#allocation2 + $0x228] sm:$0xff]
        %v1177 = vld [vmem:[#allocation2 + $0x230] sm:$0xff]
        %v1178 = vld [vmem:[#allocation2 + $0x238] sm:$0xff]
        %v1179 = vld [vmem:[#allocation2 + $0x240] sm:$0xff]
        %v1180 = vld [vmem:[#allocation2 + $0x248] sm:$0xff]
        %v1181 = vld [vmem:[#allocation2 + $0x250] sm:$0xff]
        %v1182 = vld [vmem:[#allocation2 + $0x258] sm:$0xff]
        %v1183 = vld [vmem:[#allocation2 + $0x260] sm:$0xff]
        %v1184 = vld [vmem:[#allocation2 + $0x268] sm:$0xff]
        %v1185 = vld [vmem:[#allocation2 + $0x270] sm:$0xff]
        %v1186 = vld [vmem:[#allocation2 + $0x278] sm:$0xff]
        %v1187 = vld [vmem:[#allocation2 + $0x280] sm:$0xff]
        %v1188 = vld [vmem:[#allocation2 + $0x288] sm:$0xff]
        %v1189 = vld [vmem:[#allocation2 + $0x290] sm:$0xff]
        %v1190 = vld [vmem:[#allocation2 + $0x298] sm:$0xff]
        %v1191 = vld [vmem:[#allocation2 + $0x2a0] sm:$0xff]
        %v1192 = vld [vmem:[#allocation2 + $0x2a8] sm:$0xff]
        %v1193 = vld [vmem:[#allocation2 + $0x2b0] sm:$0xff]
        %v1194 = vld [vmem:[#allocation2 + $0x2b8] sm:$0xff]
        %v1195 = vld [vmem:[#allocation2 + $0x2c0] sm:$0xff]
        %v1196 = vld [vmem:[#allocation2 + $0x2c8] sm:$0xff]
        %v1197 = vld [vmem:[#allocation2 + $0x2d0] sm:$0xff]
        %v1198 = vld [vmem:[#allocation2 + $0x2d8] sm:$0xff]
        %v1199 = vld [vmem:[#allocation2 + $0x2e0] sm:$0xff]
        %v1200 = vld [vmem:[#allocation2 + $0x2e8] sm:$0xff]
        %v1201 = vld [vmem:[#allocation2 + $0x2f0] sm:$0xff]
        %v1202 = vld [vmem:[#allocation2 + $0x2f8] sm:$0xff]
        %v1203 = vld [vmem:[#allocation2 + $0x300] sm:$0xff]
        %v1204 = vld [vmem:[#allocation2 + $0x308] sm:$0xff]
        %v1205 = vld [vmem:[#allocation2 + $0x310] sm:$0xff]
        %v1206 = vld [vmem:[#allocation2 + $0x318] sm:$0xff]
        %v1207 = vld [vmem:[#allocation2 + $0x320] sm:$0xff]
        %v1208 = vld [vmem:[#allocation2 + $0x328] sm:$0xff]
        %v1209 = vld [vmem:[#allocation2 + $0x330] sm:$0xff]
        %v1210 = vld [vmem:[#allocation2 + $0x338] sm:$0xff]
        %v1211 = vld [vmem:[#allocation2 + $0x340] sm:$0xff]
        %v1212 = vld [vmem:[#allocation2 + $0x348] sm:$0xff]
        %v1213 = vld [vmem:[#allocation2 + $0x350] sm:$0xff]
        %v1214 = vld [vmem:[#allocation2 + $0x358] sm:$0xff]
        %v1215 = vld [vmem:[#allocation2 + $0x360] sm:$0xff]
        %v1216 = vld [vmem:[#allocation2 + $0x368] sm:$0xff]
        %v1217 = vld [vmem:[#allocation2 + $0x370] sm:$0xff]
        %v1218 = vld [vmem:[#allocation2 + $0x378] sm:$0xff]
        %v1219 = vld [vmem:[#allocation2 + $0x380] sm:$0xff]
        %v1220 = vld [vmem:[#allocation2 + $0x388] sm:$0xff]
        %v1221 = vld [vmem:[#allocation2 + $0x390] sm:$0xff]
        %v1222 = vld [vmem:[#allocation2 + $0x398] sm:$0xff]
        %v1223 = vld [vmem:[#allocation2 + $0x3a0] sm:$0xff]
        %v1224 = vld [vmem:[#allocation2 + $0x3a8] sm:$0xff]
        %v1225 = vld [vmem:[#allocation2 + $0x3b0] sm:$0xff]
        %v1226 = vld [vmem:[#allocation2 + $0x3b8] sm:$0xff]
        %v1227 = vld [vmem:[#allocation2 + $0x3c0] sm:$0xff]
        %v1228 = vld [vmem:[#allocation2 + $0x3c8] sm:$0xff]
        %v1229 = vld [vmem:[#allocation2 + $0x3d0] sm:$0xff]
        %v1230 = vld [vmem:[#allocation2 + $0x3d8] sm:$0xff]
        %v1231 = vld [vmem:[#allocation2 + $0x3e0] sm:$0xff]
        %v1232 = vld [vmem:[#allocation2 + $0x3e8] sm:$0xff]
        %v1233 = vld [vmem:[#allocation2 + $0x3f0] sm:$0xff]
        %v1234 = vld [vmem:[#allocation2 + $0x3f8] sm:$0xff]
        %v1236 = vcombine.high %v1106, %v1106
        %1238 = vmatprep.subr.mxu0 %v1108
        %1239 = vmatpush1.msra.mxu0 %v1107
        %1240 = vmatprep.subr.mxu0 %v1112
        %1241 = vmatpush1.msra.mxu0 %v1111
        %1242 = vmatprep.subr.mxu0 %v1116
        %1243 = vmatpush1.msra.mxu0 %v1115
        %1244 = vmatprep.subr.mxu0 %v1120
        %1245 = vmatpush1.msra.mxu0 %v1119
        %1246 = vmatprep.subr.mxu0 %v1124
        %1247 = vmatpush1.msra.mxu0 %v1123
        %1248 = vmatprep.subr.mxu0 %v1128
        %1249 = vmatpush1.msra.mxu0 %v1127
        %1250 = vmatprep.subr.mxu0 %v1132
        %1251 = vmatpush1.msra.mxu0 %v1131
        %1252 = vmatprep.subr.mxu0 %v1136
        %1253 = vmatpush1.msra.mxu0 %v1135
        %1254 = vmatprep.subr.mxu0 %v1140
        %1255 = vmatpush1.msra.mxu0 %v1139
        %1256 = vmatprep.subr.mxu0 %v1144
        %1257 = vmatpush1.msra.mxu0 %v1143
        %1258 = vmatprep.subr.mxu0 %v1148
        %1259 = vmatpush1.msra.mxu0 %v1147
        %1260 = vmatprep.subr.mxu0 %v1152
        %1261 = vmatpush1.msra.mxu0 %v1151
        %1262 = vmatprep.subr.mxu0 %v1156
        %1263 = vmatpush1.msra.mxu0 %v1155
        %1264 = vmatprep.subr.mxu0 %v1160
        %1265 = vmatpush1.msra.mxu0 %v1159
        %1266 = vmatprep.subr.mxu0 %v1164
        %1267 = vmatpush1.msra.mxu0 %v1163
        %1268 = vmatprep.subr.mxu0 %v1168
        %1269 = vmatpush1.msra.mxu0 %v1167
        %1270 = vmatprep.subr.mxu0 %v1172
        %1271 = vmatpush1.msra.mxu0 %v1171
        %1272 = vmatprep.subr.mxu0 %v1176
        %1273 = vmatpush1.msra.mxu0 %v1175
        %1274 = vmatprep.subr.mxu0 %v1180
        %1275 = vmatpush1.msra.mxu0 %v1179
        %1276 = vmatprep.subr.mxu0 %v1184
        %1277 = vmatpush1.msra.mxu0 %v1183
        %1278 = vmatprep.subr.mxu0 %v1188
        %1279 = vmatpush1.msra.mxu0 %v1187
        %1280 = vmatprep.subr.mxu0 %v1192
        %1281 = vmatpush1.msra.mxu0 %v1191
        %1282 = vmatprep.subr.mxu0 %v1196
        %1283 = vmatpush1.msra.mxu0 %v1195
        %1284 = vmatprep.subr.mxu0 %v1200
        %1285 = vmatpush1.msra.mxu0 %v1199
        %1286 = vmatprep.subr.mxu0 %v1204
        %1287 = vmatpush1.msra.mxu0 %v1203
        %1288 = vmatprep.subr.mxu0 %v1208
        %1289 = vmatpush1.msra.mxu0 %v1207
        %1290 = vmatprep.subr.mxu0 %v1212
        %1291 = vmatpush1.msra.mxu0 %v1211
        %1292 = vmatprep.subr.mxu0 %v1216
        %1293 = vmatpush1.msra.mxu0 %v1215
        %1294 = vmatprep.subr.mxu0 %v1220
        %1295 = vmatpush1.msra.mxu0 %v1219
        %1296 = vmatprep.subr.mxu0 %v1224
        %1297 = vmatpush1.msra.mxu0 %v1223
        %1298 = vmatprep.subr.mxu0 %v1228
        %1299 = vmatpush1.msra.mxu0 %v1227
        %1300 = vmatprep.subr.mxu0 %v1232
        %1301 = vmatpush1.msra.mxu0 %v1231
        %1302 = vmatprep.mubr.f32.mxu0 %v1236
        %1303 = vmatmul.mubr.f32.gmra.mrb[0].mxu0 %v1106
        %v1304 = vpop.f32.mrb[0].mxu0
        %v1305 = vadd.f32 0.0, %v1304
        %v1306 = vpop.f32.mrb[0].mxu0
        %v1307 = vadd.f32 0.0, %v1306
        %1308 = vdwg.mxu0
        %1309 = vmatprep.subr.mxu0 %v1110
        %1310 = vmatpush1.msra.mxu0 %v1109
        %1311 = vmatprep.subr.mxu0 %v1114
        %1312 = vmatpush1.msra.mxu0 %v1113
        %1313 = vmatprep.subr.mxu0 %v1118
        %1314 = vmatpush1.msra.mxu0 %v1117
        %1315 = vmatprep.subr.mxu0 %v1122
        %1316 = vmatpush1.msra.mxu0 %v1121
        %1317 = vmatprep.subr.mxu0 %v1126
        %1318 = vmatpush1.msra.mxu0 %v1125
        %1319 = vmatprep.subr.mxu0 %v1130
        %1320 = vmatpush1.msra.mxu0 %v1129
        %1321 = vmatprep.subr.mxu0 %v1134
        %1322 = vmatpush1.msra.mxu0 %v1133
        %1323 = vmatprep.subr.mxu0 %v1138
        %1324 = vmatpush1.msra.mxu0 %v1137
        %1325 = vmatprep.subr.mxu0 %v1142
        %1326 = vmatpush1.msra.mxu0 %v1141
        %1327 = vmatprep.subr.mxu0 %v1146
        %1328 = vmatpush1.msra.mxu0 %v1145
        %1329 = vmatprep.subr.mxu0 %v1150
        %1330 = vmatpush1.msra.mxu0 %v1149
        %1331 = vmatprep.subr.mxu0 %v1154
        %1332 = vmatpush1.msra.mxu0 %v1153
        %1333 = vmatprep.subr.mxu0 %v1158
        %1334 = vmatpush1.msra.mxu0 %v1157
        %1335 = vmatprep.subr.mxu0 %v1162
        %1336 = vmatpush1.msra.mxu0 %v1161
        %1337 = vmatprep.subr.mxu0 %v1166
        %1338 = vmatpush1.msra.mxu0 %v1165
        %1339 = vmatprep.subr.mxu0 %v1170
        %1340 = vmatpush1.msra.mxu0 %v1169
        %1341 = vmatprep.subr.mxu0 %v1174
        %1342 = vmatpush1.msra.mxu0 %v1173
        %1343 = vmatprep.subr.mxu0 %v1178
        %1344 = vmatpush1.msra.mxu0 %v1177
        %1345 = vmatprep.subr.mxu0 %v1182
        %1346 = vmatpush1.msra.mxu0 %v1181
        %1347 = vmatprep.subr.mxu0 %v1186
        %1348 = vmatpush1.msra.mxu0 %v1185
        %1349 = vmatprep.subr.mxu0 %v1190
        %1350 = vmatpush1.msra.mxu0 %v1189
        %1351 = vmatprep.subr.mxu0 %v1194
        %1352 = vmatpush1.msra.mxu0 %v1193
        %1353 = vmatprep.subr.mxu0 %v1198
        %1354 = vmatpush1.msra.mxu0 %v1197
        %1355 = vmatprep.subr.mxu0 %v1202
        %1356 = vmatpush1.msra.mxu0 %v1201
        %1357 = vmatprep.subr.mxu0 %v1206
        %1358 = vmatpush1.msra.mxu0 %v1205
        %1359 = vmatprep.subr.mxu0 %v1210
        %1360 = vmatpush1.msra.mxu0 %v1209
        %1361 = vmatprep.subr.mxu0 %v1214
        %1362 = vmatpush1.msra.mxu0 %v1213
        %1363 = vmatprep.subr.mxu0 %v1218
        %1364 = vmatpush1.msra.mxu0 %v1217
        %1365 = vmatprep.subr.mxu0 %v1222
        %1366 = vmatpush1.msra.mxu0 %v1221
        %1367 = vmatprep.subr.mxu0 %v1226
        %1368 = vmatpush1.msra.mxu0 %v1225
        %1369 = vmatprep.subr.mxu0 %v1230
        %1370 = vmatpush1.msra.mxu0 %v1229
        %1371 = vmatprep.subr.mxu0 %v1234
        %1372 = vmatpush1.msra.mxu0 %v1233
        %1373 = vmatprep.mubr.f32.mxu0 %v1236
        %1374 = vmatmul.mubr.f32.gmra.mrb[0].mxu0 %v1106
        %v1375 = vpop.f32.mrb[0].mxu0
        %v1376 = vadd.f32 0.0, %v1375
        %v1377 = vpop.f32.mrb[0].mxu0
        %v1378 = vadd.f32 0.0, %v1377
        %1379 = vdwg.mxu0
        %v1384 = vcombine.low %v1305, %v1307
        %v1385 = vcombine.low %v1376, %v1378
        %1388 = vst [vmem:[%s215] sm:$0xff] %v1384
        %1389 = vst [vmem:[%s215 + $0x8] sm:$0xff] %v1385
        %s1390 = sand.u32 %s98, 1
        %s1391 = scalar_lea.sflag [#allocation5], %s1390
        %s1392 = sand.u32 %s98, 1
        %s1393 = smul.addr %s1392, 16
        %s1394 = scalar_lea.vmem [#allocation8], %s1393
        // Predicated region
        $region37: #{tpu_custom_call.1} parent=27 // pred_check
          %p1395 = pneg %p108
        $region38: #{tpu_custom_call.1} parent=27 // pred_check_branch
          %1397 = sbr.rel (%p1395) target = $region40
        $region39: #{tpu_custom_call.1} parent=27 // pred_region
          %s1398 = smul.u32 4, %s27
          %s1400 = ssub.s32 256, 256
          %1401 = vsyncadd %s1391, %s1400
          %s1402 = smul.addr %s26, 8
          %s1403 = sadd.s32 %s1398, %s1402
          %s1404 = smul.addr %s1403, 64
          %s1405 = scalar_lea.hbm %s2, %s1404
          %s1407 = sshll.u32 %s1394, 4
          %s1408 = int_to_ptr.vmem [resolvable:$true] %s1407
          %1410 = dma.vmem_to_hbm [thread:$0]  %s1408, 256, %s1405, %s1391
        $region40: #{tpu_custom_call.1} parent=27 // pred_fallthru
          _
      $region28: #{tpu_custom_call.1} parent=5 // pred_fallthru
        _
      %p1411 = scmp.le.s32.totalorder 2, %s17
      // Predicated region
      $region41: #{tpu_custom_call.1} parent=5 // pred_check
        %p1412 = pneg %p1411
      $region42: #{tpu_custom_call.1} parent=5 // pred_check_branch
        %1414 = sbr.rel (%p1412) target = $region44
      $region43: #{tpu_custom_call.1} parent=5 // pred_region
        %s1415 = ssub.s32 %s17, 2
        // Predicated region
        $region45: #{tpu_custom_call.1} parent=43 // pred_check
          %p1416 = pneg %p114
        $region46: #{tpu_custom_call.1} parent=43 // pred_check_branch
          %1418 = sbr.rel (%p1416) target = $region48
        $region47: #{tpu_custom_call.1} parent=43 // pred_region
          %s1419 = sand.u32 %s99, 1
          %s1420 = scalar_lea.sflag [#allocation5], %s1419
          %s1421 = sand.u32 %s99, 1
          %s1422 = smul.addr %s1421, 16
          %s1423 = scalar_lea.vmem [#allocation8], %s1422
          %1424 = dma.done %s1420, 256
        $region48: #{tpu_custom_call.1} parent=43 // pred_fallthru
          _
      $region44: #{tpu_custom_call.1} parent=5 // pred_fallthru
        _
    $region6: #{tpu_custom_call.1} parent=1 // loop_footer
      %s21 = sadd.s32 1, %s17
    $region7: #{tpu_custom_call.1} parent=1 // loop_footer_branch
      %16 = sbr.rel target = $region3
    $region8: #{tpu_custom_call.1} parent=1 // loop_exit
      _
    %1425 = vsyncpa [#allocation4], 1
    %s1426 = scalar_lea.sflag [#allocation4], 1
    %1427 = vsyncpa %s1426, 1
    %1428 = vsyncpa [#allocation7], 1
    %s1429 = scalar_lea.sflag [#allocation7], 1
    %1430 = vsyncpa %s1429, 1
    %1431 = vsyncpa [#allocation5], 1
    %s1432 = scalar_lea.sflag [#allocation5], 1
    %1433 = vsyncpa %s1432, 1

</llo_original>
